<compile_context>
chip_gen: v5e
topology: v5e:2x2
jax: 0.10.0
libtpu: 0.0.40
codegen_flags: <defaults>
</compile_context>

<pallas_src>
import functools

import jax
import jax.numpy as jnp
import numpy as np
from jax.experimental import pallas as pl
from jax.experimental.pallas import tpu as pltpu

EPS = 1e-5


def _dwsep_conv_stats_kernel(x_ref, dw_ref, pw_ref, y_ref, sum_ref, ssq_ref,
                             *, stride):
    """Phase 1: ReLU -> depthwise conv (VPU) -> pointwise conv (MXU) + BN partials.

    x_ref:   (Hp, Wp, Cin)    zero-padded input for one image (N squeezed)
    dw_ref:  (K, K, Cin)      depthwise filter
    pw_ref:  (Cin, Cout)      pointwise (1x1) filter, bf16
    y_ref:   (Hout, Wout, Cout) pre-BN conv output (f32)
    sum_ref: (1, Cout)        per-image channel sums of y
    ssq_ref: (1, Cout)        per-image channel sums of y^2
    """
    hp, wp, cin = x_ref.shape
    hout, wout, cout = y_ref.shape
    k = dw_ref.shape[0]

    # ReLU (zero padding unaffected since ReLU(0) == 0).
    xp = jnp.maximum(x_ref[...].astype(jnp.float32), 0.0)
    dw = dw_ref[...].astype(jnp.float32)

    # Depthwise convolution: K*K shifted multiply-accumulates on the VPU.
    # Hoist the W (sublane-axis) shift out of the kh loop: one sublane relayout
    # per kw instead of per (kh, kw) tap; the kh shift is along a leading dim.
    acc = None
    for kw in range(k):
        xw = jax.lax.slice(
            xp, (0, kw, 0),
            (hp, kw + (wout - 1) * stride + 1, cin),
            (1, stride, 1))
        for kh in range(k):
            win = jax.lax.slice(
                xw, (kh, 0, 0),
                (kh + (hout - 1) * stride + 1, wout, cin),
                (stride, 1, 1))
            term = win * dw[kh, kw].reshape(1, 1, cin)
            acc = term if acc is None else acc + term

    # Pointwise (1x1) conv == channel matmul on the MXU: bf16 operands, f32 acc.
    flat = acc.reshape(hout * wout, cin).astype(jnp.bfloat16)
    y = jnp.dot(flat, pw_ref[...], preferred_element_type=jnp.float32)  # (m, Cout)

    # Single-pass BatchNorm partial statistics for this image.
    sum_ref[...] = jnp.sum(y, axis=0, keepdims=True)
    ssq_ref[...] = jnp.sum(y * y, axis=0, keepdims=True)

    y_ref[...] = y.reshape(hout, wout, cout)


def _bn_apply_kernel(y_ref, sum_ref, ssq_ref, gamma_ref, beta_ref, o_ref,
                     *, count):
    """Phase 2: reduce BN partials, fold BN into one affine, apply y*scale + shift.

    y_ref:            (Hout, Wout, Cout)  pre-BN conv output for one image
    sum_ref/ssq_ref:  (N, 1, Cout)        per-image partial sums (full, resident)
    gamma_ref/beta_ref: (1, Cout)
    o_ref:            (Hout, Wout, Cout)
    """
    cout = o_ref.shape[-1]
    inv_n = 1.0 / count

    total = jnp.sum(sum_ref[...], axis=0)        # (1, Cout)
    total_sq = jnp.sum(ssq_ref[...], axis=0)     # (1, Cout)
    mean = total * inv_n
    var = jnp.maximum(total_sq * inv_n - mean * mean, 0.0)   # biased variance
    inv = jax.lax.rsqrt(var + EPS)
    scale = gamma_ref[...].astype(jnp.float32) * inv
    shift = beta_ref[...].astype(jnp.float32) - mean * scale

    o_ref[...] = (y_ref[...] * scale.reshape(1, 1, cout)
                  + shift.reshape(1, 1, cout)).astype(o_ref.dtype)


def basic_block_exit(x_nchw, dw_weight, pw_weight, gamma, beta,
                     *, stride=1, padding=1):
    """x_nchw: (N, Cin, H, W).  PyTorch weight layouts:
       dw_weight: (Cin, 1, K, K), pw_weight: (Cout, Cin, 1, 1)."""
    n, cin, h, w = x_nchw.shape
    k = dw_weight.shape[-1]
    cout = pw_weight.shape[0]
    hout = (h + 2 * padding - k) // stride + 1
    wout = (w + 2 * padding - k) // stride + 1
    hp, wp = h + 2 * padding, w + 2 * padding

    # Layout glue: NCHW -> NHWC, weights to (K,K,Cin) / (Cin,Cout).
    x = jnp.transpose(x_nchw, (0, 2, 3, 1))
    # TODO(synk): handle the 1-pixel halo inside the kernel (boundary-aware taps)
    # to avoid this extra full-activation HBM round trip through jnp.pad.
    xpad = jnp.pad(x, ((0, 0), (padding, padding), (padding, padding), (0, 0)))
    dw = jnp.transpose(dw_weight[:, 0, :, :], (1, 2, 0))          # (K, K, Cin)
    pw = jnp.transpose(pw_weight[:, :, 0, 0], (1, 0)).astype(jnp.bfloat16)  # (Cin, Cout)
    g = gamma.reshape(1, cout).astype(jnp.float32)
    b = beta.reshape(1, cout).astype(jnp.float32)

    cparams = pltpu.CompilerParams(
        dimension_semantics=("parallel",),           # shard batch across TCs (v7x)
        vmem_limit_bytes=48 * 1024 * 1024)           # explicit, fits v7x's 64 MiB

    # Phase 1: per-image conv output + per-image BN partial statistics.
    y, psum, pssq = pl.pallas_call(
        functools.partial(_dwsep_conv_stats_kernel, stride=stride),
        out_shape=(jax.ShapeDtypeStruct((n, hout, wout, cout), jnp.float32),
                   jax.ShapeDtypeStruct((n, 1, cout), jnp.float32),
                   jax.ShapeDtypeStruct((n, 1, cout), jnp.float32)),
        grid=(n,),
        in_specs=[
            pl.BlockSpec((None, hp, wp, cin), lambda i: (i, 0, 0, 0)),
            pl.BlockSpec((k, k, cin), lambda i: (0, 0, 0)),
            pl.BlockSpec((cin, cout), lambda i: (0, 0)),
        ],
        out_specs=[
            pl.BlockSpec((None, hout, wout, cout), lambda i: (i, 0, 0, 0)),
            pl.BlockSpec((None, 1, cout), lambda i: (i, 0, 0)),
            pl.BlockSpec((None, 1, cout), lambda i: (i, 0, 0)),
        ],
        compiler_params=cparams,
    )(xpad, dw, pw)

    # Phase 2: global stats -> fused affine -> normalize, tiled over the batch.
    out_nhwc = pl.pallas_call(
        functools.partial(_bn_apply_kernel, count=float(n * hout * wout)),
        out_shape=jax.ShapeDtypeStruct((n, hout, wout, cout), jnp.float32),
        grid=(n,),
        in_specs=[
            pl.BlockSpec((None, hout, wout, cout), lambda i: (i, 0, 0, 0)),
            pl.BlockSpec((n, 1, cout), lambda i: (0, 0, 0)),
            pl.BlockSpec((n, 1, cout), lambda i: (0, 0, 0)),
            pl.BlockSpec((1, cout), lambda i: (0, 0)),
            pl.BlockSpec((1, cout), lambda i: (0, 0)),
        ],
        out_specs=pl.BlockSpec((None, hout, wout, cout), lambda i: (i, 0, 0, 0)),
        compiler_params=cparams,
    )(y, psum, pssq, g, b)

    return jnp.transpose(out_nhwc, (0, 3, 1, 2))                  # back to NCHW


def _reference(x_nchw, dw_weight, pw_weight, gamma, beta, *, stride=1, padding=1):
    """Plain-JAX reference (same math, lax convs) for a sanity check."""
    cin = x_nchw.shape[1]
    x = jnp.transpose(x_nchw, (0, 2, 3, 1))
    x = jnp.maximum(x, 0.0)
    dw_hwio = jnp.transpose(dw_weight, (2, 3, 1, 0))              # (K,K,1,Cin)
    y = jax.lax.conv_general_dilated(
        x, dw_hwio, (stride, stride), [(padding, padding)] * 2,
        dimension_numbers=("NHWC", "HWIO", "NHWC"),
        feature_group_count=cin)
    pw_hwio = jnp.transpose(pw_weight, (2, 3, 1, 0))              # (1,1,Cin,Cout)
    y = jax.lax.conv_general_dilated(
        y, pw_hwio, (1, 1), [(0, 0)] * 2,
        dimension_numbers=("NHWC", "HWIO", "NHWC"))
    mean = jnp.mean(y, axis=(0, 1, 2), keepdims=True)
    var = jnp.mean((y - mean) ** 2, axis=(0, 1, 2), keepdims=True)
    y = (y - mean) * jax.lax.rsqrt(var + EPS) * gamma + beta
    return jnp.transpose(y, (0, 3, 1, 2))


if __name__ == "__main__":
    key = jax.random.PRNGKey(0)
    k_x, k_dw, k_pw, k_g, k_b = jax.random.split(key, 5)

    N, CIN, COUT, H, W, K = 2, 4, 8, 16, 16, 3
    STRIDE, PAD = 1, 1

    x = jax.random.normal(k_x, (N, CIN, H, W), jnp.float32)
    dw_weight = jax.random.normal(k_dw, (CIN, 1, K, K), jnp.float32) * 0.2
    pw_weight = jax.random.normal(k_pw, (COUT, CIN, 1, 1), jnp.float32) * 0.2
    gamma = jax.random.normal(k_g, (COUT,), jnp.float32) * 0.5 + 1.0
    beta = jax.random.normal(k_b, (COUT,), jnp.float32) * 0.1

    out = basic_block_exit(x, dw_weight, pw_weight, gamma, beta,
                           stride=STRIDE, padding=PAD)
    out = jax.block_until_ready(out)

    ref = _reference(x, dw_weight, pw_weight, gamma, beta,
                     stride=STRIDE, padding=PAD)
    # bf16 MXU operands (f32 accumulation) -> slightly looser tolerance than pure f32.
    np.testing.assert_allclose(np.asarray(out), np.asarray(ref),
                               rtol=2e-2, atol=2e-2)

    print("KERNEL_OK")
</pallas_src>

<mosaic_0001>
module attributes {stable_mosaic.version = 11 : i64} {
  func.func @_dwsep_conv_stats_kernel(%arg0: i32, %arg1: memref<1x18x18x4xf32, #tpu.memory_space<vmem>>, %arg2: memref<3x3x4xf32, #tpu.memory_space<vmem>>, %arg3: memref<4x8xbf16, #tpu.memory_space<vmem>>, %arg4: memref<1x16x16x8xf32, #tpu.memory_space<vmem>>, %arg5: memref<1x1x8xf32, #tpu.memory_space<vmem>>, %arg6: memref<1x1x8xf32, #tpu.memory_space<vmem>>) attributes {dimension_semantics = [#tpu.dimension_semantics<parallel>], iteration_bounds = array<i64: 2>, scalar_prefetch = 0 : i64, scratch_operands = 0 : i64, tpu.core_type = #tpu.core_type<tc>, window_params = [{transform_indices = @transform_0, window_bounds = array<i64: 1, 18, 18, 4>}, {pipeline_mode = #tpu.pipeline_mode<synchronous>, transform_indices = @transform_1, window_bounds = array<i64: 3, 3, 4>}, {pipeline_mode = #tpu.pipeline_mode<synchronous>, transform_indices = @transform_2, window_bounds = array<i64: 4, 8>}, {transform_indices = @transform_3, window_bounds = array<i64: 1, 16, 16, 8>}, {transform_indices = @transform_4, window_bounds = array<i64: 1, 1, 8>}, {transform_indices = @transform_5, window_bounds = array<i64: 1, 1, 8>}]} {
    %c0 = arith.constant 0 : index
    %c0_0 = arith.constant 0 : index
    %c0_1 = arith.constant 0 : index
    %c0_2 = arith.constant 0 : index
    %0 = vector.load %arg1[%c0, %c0_0, %c0_1, %c0_2] : memref<1x18x18x4xf32, #tpu.memory_space<vmem>>, vector<1x18x18x4xf32>
    %1 = vector.shape_cast %0 : vector<1x18x18x4xf32> to vector<18x18x4xf32>
    %cst = arith.constant 0.000000e+00 : f32
    %2 = vector.broadcast %cst : f32 to vector<18x18x4xf32>
    %3 = arith.maximumf %1, %2 : vector<18x18x4xf32>
    %c0_3 = arith.constant 0 : index
    %c0_4 = arith.constant 0 : index
    %c0_5 = arith.constant 0 : index
    %4 = vector.load %arg2[%c0_3, %c0_4, %c0_5] : memref<3x3x4xf32, #tpu.memory_space<vmem>>, vector<3x3x4xf32>
    %5 = vector.extract_strided_slice %3 {offsets = [0, 0, 0], sizes = [18, 16, 4], strides = [1, 1, 1]} : vector<18x18x4xf32> to vector<18x16x4xf32>
    %6 = vector.extract_strided_slice %5 {offsets = [0, 0, 0], sizes = [16, 16, 4], strides = [1, 1, 1]} : vector<18x16x4xf32> to vector<16x16x4xf32>
    %7 = vector.extract_strided_slice %4 {offsets = [0, 0, 0], sizes = [1, 1, 4], strides = [1, 1, 1]} : vector<3x3x4xf32> to vector<1x1x4xf32>
    %8 = vector.shape_cast %7 : vector<1x1x4xf32> to vector<4xf32>
    %9 = vector.shape_cast %8 : vector<4xf32> to vector<1x1x4xf32>
    %10 = vector.broadcast %9 : vector<1x1x4xf32> to vector<16x16x4xf32>
    %11 = arith.mulf %6, %10 : vector<16x16x4xf32>
    %12 = vector.extract_strided_slice %5 {offsets = [1, 0, 0], sizes = [16, 16, 4], strides = [1, 1, 1]} : vector<18x16x4xf32> to vector<16x16x4xf32>
    %13 = vector.extract_strided_slice %4 {offsets = [1, 0, 0], sizes = [1, 1, 4], strides = [1, 1, 1]} : vector<3x3x4xf32> to vector<1x1x4xf32>
    %14 = vector.shape_cast %13 : vector<1x1x4xf32> to vector<4xf32>
    %15 = vector.shape_cast %14 : vector<4xf32> to vector<1x1x4xf32>
    %16 = vector.broadcast %15 : vector<1x1x4xf32> to vector<16x16x4xf32>
    %17 = arith.mulf %12, %16 : vector<16x16x4xf32>
    %18 = arith.addf %11, %17 : vector<16x16x4xf32>
    %19 = vector.extract_strided_slice %5 {offsets = [2, 0, 0], sizes = [16, 16, 4], strides = [1, 1, 1]} : vector<18x16x4xf32> to vector<16x16x4xf32>
    %20 = vector.extract_strided_slice %4 {offsets = [2, 0, 0], sizes = [1, 1, 4], strides = [1, 1, 1]} : vector<3x3x4xf32> to vector<1x1x4xf32>
    %21 = vector.shape_cast %20 : vector<1x1x4xf32> to vector<4xf32>
    %22 = vector.shape_cast %21 : vector<4xf32> to vector<1x1x4xf32>
    %23 = vector.broadcast %22 : vector<1x1x4xf32> to vector<16x16x4xf32>
    %24 = arith.mulf %19, %23 : vector<16x16x4xf32>
    %25 = arith.addf %18, %24 : vector<16x16x4xf32>
    %26 = vector.extract_strided_slice %3 {offsets = [0, 1, 0], sizes = [18, 16, 4], strides = [1, 1, 1]} : vector<18x18x4xf32> to vector<18x16x4xf32>
    %27 = vector.extract_strided_slice %26 {offsets = [0, 0, 0], sizes = [16, 16, 4], strides = [1, 1, 1]} : vector<18x16x4xf32> to vector<16x16x4xf32>
    %28 = vector.extract_strided_slice %4 {offsets = [0, 1, 0], sizes = [1, 1, 4], strides = [1, 1, 1]} : vector<3x3x4xf32> to vector<1x1x4xf32>
    %29 = vector.shape_cast %28 : vector<1x1x4xf32> to vector<4xf32>
    %30 = vector.shape_cast %29 : vector<4xf32> to vector<1x1x4xf32>
    %31 = vector.broadcast %30 : vector<1x1x4xf32> to vector<16x16x4xf32>
    %32 = arith.mulf %27, %31 : vector<16x16x4xf32>
    %33 = arith.addf %25, %32 : vector<16x16x4xf32>
    %34 = vector.extract_strided_slice %26 {offsets = [1, 0, 0], sizes = [16, 16, 4], strides = [1, 1, 1]} : vector<18x16x4xf32> to vector<16x16x4xf32>
    %35 = vector.extract_strided_slice %4 {offsets = [1, 1, 0], sizes = [1, 1, 4], strides = [1, 1, 1]} : vector<3x3x4xf32> to vector<1x1x4xf32>
    %36 = vector.shape_cast %35 : vector<1x1x4xf32> to vector<4xf32>
    %37 = vector.shape_cast %36 : vector<4xf32> to vector<1x1x4xf32>
    %38 = vector.broadcast %37 : vector<1x1x4xf32> to vector<16x16x4xf32>
    %39 = arith.mulf %34, %38 : vector<16x16x4xf32>
    %40 = arith.addf %33, %39 : vector<16x16x4xf32>
    %41 = vector.extract_strided_slice %26 {offsets = [2, 0, 0], sizes = [16, 16, 4], strides = [1, 1, 1]} : vector<18x16x4xf32> to vector<16x16x4xf32>
    %42 = vector.extract_strided_slice %4 {offsets = [2, 1, 0], sizes = [1, 1, 4], strides = [1, 1, 1]} : vector<3x3x4xf32> to vector<1x1x4xf32>
    %43 = vector.shape_cast %42 : vector<1x1x4xf32> to vector<4xf32>
    %44 = vector.shape_cast %43 : vector<4xf32> to vector<1x1x4xf32>
    %45 = vector.broadcast %44 : vector<1x1x4xf32> to vector<16x16x4xf32>
    %46 = arith.mulf %41, %45 : vector<16x16x4xf32>
    %47 = arith.addf %40, %46 : vector<16x16x4xf32>
    %48 = vector.extract_strided_slice %3 {offsets = [0, 2, 0], sizes = [18, 16, 4], strides = [1, 1, 1]} : vector<18x18x4xf32> to vector<18x16x4xf32>
    %49 = vector.extract_strided_slice %48 {offsets = [0, 0, 0], sizes = [16, 16, 4], strides = [1, 1, 1]} : vector<18x16x4xf32> to vector<16x16x4xf32>
    %50 = vector.extract_strided_slice %4 {offsets = [0, 2, 0], sizes = [1, 1, 4], strides = [1, 1, 1]} : vector<3x3x4xf32> to vector<1x1x4xf32>
    %51 = vector.shape_cast %50 : vector<1x1x4xf32> to vector<4xf32>
    %52 = vector.shape_cast %51 : vector<4xf32> to vector<1x1x4xf32>
    %53 = vector.broadcast %52 : vector<1x1x4xf32> to vector<16x16x4xf32>
    %54 = arith.mulf %49, %53 : vector<16x16x4xf32>
    %55 = arith.addf %47, %54 : vector<16x16x4xf32>
    %56 = vector.extract_strided_slice %48 {offsets = [1, 0, 0], sizes = [16, 16, 4], strides = [1, 1, 1]} : vector<18x16x4xf32> to vector<16x16x4xf32>
    %57 = vector.extract_strided_slice %4 {offsets = [1, 2, 0], sizes = [1, 1, 4], strides = [1, 1, 1]} : vector<3x3x4xf32> to vector<1x1x4xf32>
    %58 = vector.shape_cast %57 : vector<1x1x4xf32> to vector<4xf32>
    %59 = vector.shape_cast %58 : vector<4xf32> to vector<1x1x4xf32>
    %60 = vector.broadcast %59 : vector<1x1x4xf32> to vector<16x16x4xf32>
    %61 = arith.mulf %56, %60 : vector<16x16x4xf32>
    %62 = arith.addf %55, %61 : vector<16x16x4xf32>
    %63 = vector.extract_strided_slice %48 {offsets = [2, 0, 0], sizes = [16, 16, 4], strides = [1, 1, 1]} : vector<18x16x4xf32> to vector<16x16x4xf32>
    %64 = vector.extract_strided_slice %4 {offsets = [2, 2, 0], sizes = [1, 1, 4], strides = [1, 1, 1]} : vector<3x3x4xf32> to vector<1x1x4xf32>
    %65 = vector.shape_cast %64 : vector<1x1x4xf32> to vector<4xf32>
    %66 = vector.shape_cast %65 : vector<4xf32> to vector<1x1x4xf32>
    %67 = vector.broadcast %66 : vector<1x1x4xf32> to vector<16x16x4xf32>
    %68 = arith.mulf %63, %67 : vector<16x16x4xf32>
    %69 = arith.addf %62, %68 : vector<16x16x4xf32>
    %70 = vector.shape_cast %69 : vector<16x16x4xf32> to vector<256x4xf32>
    %71 = arith.truncf %70 : vector<256x4xf32> to vector<256x4xbf16>
    %c0_6 = arith.constant 0 : index
    %c0_7 = arith.constant 0 : index
    %72 = vector.load %arg3[%c0_6, %c0_7] : memref<4x8xbf16, #tpu.memory_space<vmem>>, vector<4x8xbf16>
    %cst_8 = arith.constant dense<0.000000e+00> : vector<256x8xf32>
    %73 = tpu.matmul %71, %72, %cst_8 {dimension_numbers = #tpu.dot_dimension_numbers<[1], [0], [0], [1], [0, 0, 1, 1], [], []>} : vector<256x4xbf16>, vector<4x8xbf16>, vector<256x8xf32> -> vector<256x8xf32>
    %cst_9 = arith.constant dense<0.000000e+00> : vector<8xf32>
    %74 = vector.multi_reduction <add>, %73, %cst_9 [0] : vector<256x8xf32> to vector<8xf32>
    %75 = vector.shape_cast %74 : vector<8xf32> to vector<1x8xf32>
    %c0_10 = arith.constant 0 : index
    %c0_11 = arith.constant 0 : index
    %c0_12 = arith.constant 0 : index
    %76 = vector.load %arg5[%c0_10, %c0_11, %c0_12] : memref<1x1x8xf32, #tpu.memory_space<vmem>>, vector<1x1x8xf32>
    %77 = vector.shape_cast %76 : vector<1x1x8xf32> to vector<1x8xf32>
    %78 = vector.shape_cast %75 : vector<1x8xf32> to vector<1x1x8xf32>
    tpu.vector_store %arg5[%c0_10, %c0_11, %c0_12], %78 {strides = array<i32>} : memref<1x1x8xf32, #tpu.memory_space<vmem>>, vector<1x1x8xf32>,
    %79 = arith.mulf %73, %73 : vector<256x8xf32>
    %cst_13 = arith.constant dense<0.000000e+00> : vector<8xf32>
    %80 = vector.multi_reduction <add>, %79, %cst_13 [0] : vector<256x8xf32> to vector<8xf32>
    %81 = vector.shape_cast %80 : vector<8xf32> to vector<1x8xf32>
    %c0_14 = arith.constant 0 : index
    %c0_15 = arith.constant 0 : index
    %c0_16 = arith.constant 0 : index
    %82 = vector.load %arg6[%c0_14, %c0_15, %c0_16] : memref<1x1x8xf32, #tpu.memory_space<vmem>>, vector<1x1x8xf32>
    %83 = vector.shape_cast %82 : vector<1x1x8xf32> to vector<1x8xf32>
    %84 = vector.shape_cast %81 : vector<1x8xf32> to vector<1x1x8xf32>
    tpu.vector_store %arg6[%c0_14, %c0_15, %c0_16], %84 {strides = array<i32>} : memref<1x1x8xf32, #tpu.memory_space<vmem>>, vector<1x1x8xf32>,
    %85 = vector.shape_cast %73 : vector<256x8xf32> to vector<16x16x8xf32>
    %c0_17 = arith.constant 0 : index
    %c0_18 = arith.constant 0 : index
    %c0_19 = arith.constant 0 : index
    %c0_20 = arith.constant 0 : index
    %86 = vector.load %arg4[%c0_17, %c0_18, %c0_19, %c0_20] : memref<1x16x16x8xf32, #tpu.memory_space<vmem>>, vector<1x16x16x8xf32>
    %87 = vector.shape_cast %86 : vector<1x16x16x8xf32> to vector<16x16x8xf32>
    %88 = vector.shape_cast %85 : vector<16x16x8xf32> to vector<1x16x16x8xf32>
    tpu.vector_store %arg4[%c0_17, %c0_18, %c0_19, %c0_20], %88 {strides = array<i32>} : memref<1x16x16x8xf32, #tpu.memory_space<vmem>>, vector<1x16x16x8xf32>,
    return
  }
  func.func @transform_0(%arg0: i32) -> (i32, i32, i32, i32) {
    %c0_i32 = arith.constant 0 : i32
    %c0_i32_0 = arith.constant 0 : i32
    %c0_i32_1 = arith.constant 0 : i32
    %c0_i32_2 = arith.constant 0 : i32
    return %arg0, %c0_i32, %c0_i32_0, %c0_i32_1 : i32, i32, i32, i32
  }
  func.func @transform_1(%arg0: i32) -> (i32, i32, i32) {
    %c0_i32 = arith.constant 0 : i32
    %c0_i32_0 = arith.constant 0 : i32
    %c0_i32_1 = arith.constant 0 : i32
    %c0_i32_2 = arith.constant 0 : i32
    return %c0_i32, %c0_i32_0, %c0_i32_1 : i32, i32, i32
  }
  func.func @transform_2(%arg0: i32) -> (i32, i32) {
    %c0_i32 = arith.constant 0 : i32
    %c0_i32_0 = arith.constant 0 : i32
    %c0_i32_1 = arith.constant 0 : i32
    return %c0_i32, %c0_i32_0 : i32, i32
  }
  func.func @transform_3(%arg0: i32) -> (i32, i32, i32, i32) {
    %c0_i32 = arith.constant 0 : i32
    %c0_i32_0 = arith.constant 0 : i32
    %c0_i32_1 = arith.constant 0 : i32
    %c0_i32_2 = arith.constant 0 : i32
    return %arg0, %c0_i32, %c0_i32_0, %c0_i32_1 : i32, i32, i32, i32
  }
  func.func @transform_4(%arg0: i32) -> (i32, i32, i32) {
    %c0_i32 = arith.constant 0 : i32
    %c0_i32_0 = arith.constant 0 : i32
    %c0_i32_1 = arith.constant 0 : i32
    return %arg0, %c0_i32, %c0_i32_0 : i32, i32, i32
  }
  func.func @transform_5(%arg0: i32) -> (i32, i32, i32) {
    %c0_i32 = arith.constant 0 : i32
    %c0_i32_0 = arith.constant 0 : i32
    %c0_i32_1 = arith.constant 0 : i32
    return %arg0, %c0_i32, %c0_i32_0 : i32, i32, i32
  }
}

</mosaic_0001>

<llo_original>
// kernel: tpu_custom_call.1
$region0: #{tpu_custom_call.1}
  #allocation0 [shape = 'u32[]', space=smem, size = 0x4, offset = 0x4, fixed_abs, tag = 'smem constant byte address 0x4 - core index']
  #allocation1 [shape = 'u32[72,128]{1,0:T(1,128)}', space=vmem, size = 0x9000, scoped, tag = 'internal scratch']
  %s0 = inlined_call_operand.vmem [shape: f32[2,18,18,4], index: 0, kind: input, shape index: {}]
  %s1 = inlined_call_operand.vmem [shape: f32[3,3,4], index: 1, kind: input, shape index: {}]
  %s2 = inlined_call_operand.vmem [shape: bf16[4,8], index: 2, kind: input, shape index: {}]
  %s3 = inlined_call_operand.vmem [shape: f32[2,16,16,8], index: 3, kind: output, shape index: {0}]
  %s4 = inlined_call_operand.hbm [shape: f32[2,1,8], index: 4, kind: output, shape index: {1}]
  %s5 = inlined_call_operand.hbm [shape: f32[2,1,8], index: 5, kind: output, shape index: {2}]
  %6 = xla_tuple %s3, %s4, %s5
  %s7 = sld [smem:[#allocation0]]
  $region61: #{tpu_custom_call.1} parent=0
    _
  %s9 = ssub.s32 1, %s7
  %s10 = scalar_select 0, %s9, %s7
  $region1: #{tpu_custom_call.1} parent=0
    #allocation2 [shape = 'u8[1024]{0}', space=vmem, size = 0x400, scoped, tag = 'output window, operand 1']
    #allocation3 [shape = 's32[2]{0}', space=sflag, size = 0x8, scoped, tag = 'scoped memory for tpu_custom_call.1']
    #allocation4 [shape = 'u8[1024]{0}', space=vmem, size = 0x400, scoped, tag = 'output window, operand 2']
    #allocation5 [shape = 's32[2]{0}', space=sflag, size = 0x8, scoped, tag = 'scoped memory for tpu_custom_call.1']
    %11 = vsyncpa [#allocation3], 0
    %s12 = scalar_lea.sflag [#allocation3], 1
    %13 = vsyncpa %s12, 0
    %14 = vsyncpa [#allocation5], 0
    %s15 = scalar_lea.sflag [#allocation5], 1
    %16 = vsyncpa %s15, 0
    loop: start=0, step=1, limit=4
    $region2: #{tpu_custom_call.1} parent=1 // loop_pre_header
      _
    $region3: #{tpu_custom_call.1} parent=1 // loop_header
      %s18 = sphi 0, %s22
      %p19 = scmp.ge.s32.totalorder %s18, 4
      %s28 = sphi 0, %s30
      %s31 = sphi 0, %s28
      %s32 = sphi 0, %s31
      %s48 = sphi 0, %s32
      %s52 = sphi 0, %s52
      %s54 = sphi 0, %s52
      %s55 = sphi 0, %s54
      %s69 = sphi 0, %s55
      %s73 = sphi 0, %s73
      %s75 = sphi 0, %s73
      %s76 = sphi 0, %s75
      %s90 = sphi 0, %s76
      %s96 = sphi 0, %s98
      %s99 = sphi 0, %s96
      %s100 = sphi 0, %s99
      %s116 = sphi 0, %s100
      %s122 = sphi 0, %s124
      %s125 = sphi 0, %s122
      %s126 = sphi 0, %s125
      %s142 = sphi 0, %s126
      %s148 = sphi 0, %s150
      %s151 = sphi 0, %s148
      %s152 = sphi 0, %s151
      %s168 = sphi 0, %s152
    $region4: #{tpu_custom_call.1} parent=1 // loop_header_branch
      %21 = sbr.rel (%p19) target = $region8
    $region5: #{tpu_custom_call.1} parent=1 // loop_body
      %s23 = ssub.s32 %s18, 1
      %s24 = ssub.s32 %s18, 2
      %s25 = sadd.s32 %s18, 1
      %s26 = ssub.s32 %s18, %s25
      %p27 = scmp.eq.s32.totalorder %s26, 0
      %s29 = sadd.s32 %s28, 1
      %s30 = scalar_select %p27, %s28, %s29
      %p33 = pneg %p27
      %p34 = scmp.eq.s32.totalorder %s18, 1
      %p35 = por %p33, %p34
      %p36 = scmp.ne.s32.totalorder %s28, %s31
      %p37 = scmp.eq.s32.totalorder %s18, 0
      %p38 = por %p36, %p37
      %p39 = scmp.ne.s32.totalorder %s28, %s31
      %p40 = scmp.eq.s32.totalorder %s23, 1
      %p41 = por %p39, %p40
      %p42 = scmp.ne.s32.totalorder %s31, %s32
      %p43 = scmp.eq.s32.totalorder %s23, 0
      %p44 = por %p42, %p43
      %p45 = scmp.ne.s32.totalorder %s31, %s32
      %p46 = scmp.eq.s32.totalorder %s24, 1
      %p47 = por %p45, %p46
      %p49 = scmp.ne.s32.totalorder %s32, %s48
      %p50 = scmp.eq.s32.totalorder %s24, 0
      %p51 = por %p49, %p50
      %s53 = sadd.s32 %s52, 1
      %p56 = scmp.eq.s32.totalorder %s18, 1
      %p57 = scmp.ne.s32.totalorder %s52, %s54
      %p58 = scmp.eq.s32.totalorder %s18, 0
      %p59 = por %p57, %p58
      %p60 = scmp.ne.s32.totalorder %s52, %s54
      %p61 = scmp.eq.s32.totalorder %s23, 1
      %p62 = por %p60, %p61
      %p63 = scmp.ne.s32.totalorder %s54, %s55
      %p64 = scmp.eq.s32.totalorder %s23, 0
      %p65 = por %p63, %p64
      %p66 = scmp.ne.s32.totalorder %s54, %s55
      %p67 = scmp.eq.s32.totalorder %s24, 1
      %p68 = por %p66, %p67
      %p70 = scmp.ne.s32.totalorder %s55, %s69
      %p71 = scmp.eq.s32.totalorder %s24, 0
      %p72 = por %p70, %p71
      %s74 = sadd.s32 %s73, 1
      %p77 = scmp.eq.s32.totalorder %s18, 1
      %p78 = scmp.ne.s32.totalorder %s73, %s75
      %p79 = scmp.eq.s32.totalorder %s18, 0
      %p80 = por %p78, %p79
      %p81 = scmp.ne.s32.totalorder %s73, %s75
      %p82 = scmp.eq.s32.totalorder %s23, 1
      %p83 = por %p81, %p82
      %p84 = scmp.ne.s32.totalorder %s75, %s76
      %p85 = scmp.eq.s32.totalorder %s23, 0
      %p86 = por %p84, %p85
      %p87 = scmp.ne.s32.totalorder %s75, %s76
      %p88 = scmp.eq.s32.totalorder %s24, 1
      %p89 = por %p87, %p88
      %p91 = scmp.ne.s32.totalorder %s76, %s90
      %p92 = scmp.eq.s32.totalorder %s24, 0
      %p93 = por %p91, %p92
      %s94 = ssub.s32 %s18, %s25
      %p95 = scmp.eq.s32.totalorder %s94, 0
      %s97 = sadd.s32 %s96, 1
      %s98 = scalar_select %p95, %s96, %s97
      %p101 = pneg %p95
      %p102 = scmp.eq.s32.totalorder %s18, 1
      %p103 = por %p101, %p102
      %p104 = scmp.ne.s32.totalorder %s96, %s99
      %p105 = scmp.eq.s32.totalorder %s18, 0
      %p106 = por %p104, %p105
      %p107 = scmp.ne.s32.totalorder %s96, %s99
      %p108 = scmp.eq.s32.totalorder %s23, 1
      %p109 = por %p107, %p108
      %p110 = scmp.ne.s32.totalorder %s99, %s100
      %p111 = scmp.eq.s32.totalorder %s23, 0
      %p112 = por %p110, %p111
      %p113 = scmp.ne.s32.totalorder %s99, %s100
      %p114 = scmp.eq.s32.totalorder %s24, 1
      %p115 = por %p113, %p114
      %p117 = scmp.ne.s32.totalorder %s100, %s116
      %p118 = scmp.eq.s32.totalorder %s24, 0
      %p119 = por %p117, %p118
      %s120 = ssub.s32 %s18, %s25
      %p121 = scmp.eq.s32.totalorder %s120, 0
      %s123 = sadd.s32 %s122, 1
      %s124 = scalar_select %p121, %s122, %s123
      %p127 = pneg %p121
      %p128 = scmp.eq.s32.totalorder %s18, 1
      %p129 = por %p127, %p128
      %p130 = scmp.ne.s32.totalorder %s122, %s125
      %p131 = scmp.eq.s32.totalorder %s18, 0
      %p132 = por %p130, %p131
      %p133 = scmp.ne.s32.totalorder %s122, %s125
      %p134 = scmp.eq.s32.totalorder %s23, 1
      %p135 = por %p133, %p134
      %p136 = scmp.ne.s32.totalorder %s125, %s126
      %p137 = scmp.eq.s32.totalorder %s23, 0
      %p138 = por %p136, %p137
      %p139 = scmp.ne.s32.totalorder %s125, %s126
      %p140 = scmp.eq.s32.totalorder %s24, 1
      %p141 = por %p139, %p140
      %p143 = scmp.ne.s32.totalorder %s126, %s142
      %p144 = scmp.eq.s32.totalorder %s24, 0
      %p145 = por %p143, %p144
      %s146 = ssub.s32 %s18, %s25
      %p147 = scmp.eq.s32.totalorder %s146, 0
      %s149 = sadd.s32 %s148, 1
      %s150 = scalar_select %p147, %s148, %s149
      %p153 = pneg %p147
      %p154 = scmp.eq.s32.totalorder %s18, 1
      %p155 = por %p153, %p154
      %p156 = scmp.ne.s32.totalorder %s148, %s151
      %p157 = scmp.eq.s32.totalorder %s18, 0
      %p158 = por %p156, %p157
      %p159 = scmp.ne.s32.totalorder %s148, %s151
      %p160 = scmp.eq.s32.totalorder %s23, 1
      %p161 = por %p159, %p160
      %p162 = scmp.ne.s32.totalorder %s151, %s152
      %p163 = scmp.eq.s32.totalorder %s23, 0
      %p164 = por %p162, %p163
      %p165 = scmp.ne.s32.totalorder %s151, %s152
      %p166 = scmp.eq.s32.totalorder %s24, 1
      %p167 = por %p165, %p166
      %p169 = scmp.ne.s32.totalorder %s152, %s168
      %p170 = scmp.eq.s32.totalorder %s24, 0
      %p171 = por %p169, %p170
      %p172 = scmp.le.s32.totalorder 1, %s18
      %p173 = scmp.lt.s32.totalorder %s18, 3
      %p174 = pnand %p172, %p173
      %p175 = pneg %p174
      // Predicated region
      $region9: #{tpu_custom_call.1} parent=5 // pred_check
        _
      $region10: #{tpu_custom_call.1} parent=5 // pred_check_branch
        %177 = sbr.rel (%p174) target = $region12
      $region11: #{tpu_custom_call.1} parent=5 // pred_region
        %s178 = ssub.s32 %s18, 1
        // Predicated region
        $region13: #{tpu_custom_call.1} parent=11 // pred_check
          %p179 = pneg %p65
        $region14: #{tpu_custom_call.1} parent=11 // pred_check_branch
          %181 = sbr.rel (%p179) target = $region16
        $region15: #{tpu_custom_call.1} parent=11 // pred_region
          _
        $region16: #{tpu_custom_call.1} parent=11 // pred_fallthru
          _
        // Predicated region
        $region17: #{tpu_custom_call.1} parent=11 // pred_check
          %p182 = pneg %p86
        $region18: #{tpu_custom_call.1} parent=11 // pred_check_branch
          %184 = sbr.rel (%p182) target = $region20
        $region19: #{tpu_custom_call.1} parent=11 // pred_region
          _
        $region20: #{tpu_custom_call.1} parent=11 // pred_fallthru
          _
      $region12: #{tpu_custom_call.1} parent=5 // pred_fallthru
        _
      %p185 = scmp.lt.s32.totalorder %s18, 2
      // Predicated region
      $region21: #{tpu_custom_call.1} parent=5 // pred_check
        %p186 = pneg %p185
      $region22: #{tpu_custom_call.1} parent=5 // pred_check_branch
        %188 = sbr.rel (%p186) target = $region24
      $region23: #{tpu_custom_call.1} parent=5 // pred_region
        // Predicated region
        $region25: #{tpu_custom_call.1} parent=23 // pred_check
          %p189 = pneg %p38
        $region26: #{tpu_custom_call.1} parent=23 // pred_check_branch
          %191 = sbr.rel (%p189) target = $region28
        $region27: #{tpu_custom_call.1} parent=23 // pred_region
          %p192 = scmp.lt.s32.totalorder %s18, 1
          %s193 = scalar_select %p192, %s18, 1
          %s194 = smul.addr %s193, 54
          %s195 = smul.addr %s194, 8
          %s196 = scalar_lea.vmem %s0, %s195
        $region28: #{tpu_custom_call.1} parent=23 // pred_fallthru
          _
      $region24: #{tpu_custom_call.1} parent=5 // pred_fallthru
        _
      %p197 = scmp.le.s32.totalorder 1, %s18
      %p198 = scmp.lt.s32.totalorder %s18, 3
      %p199 = pnand %p197, %p198
      %p200 = pneg %p199
      // Predicated region
      $region29: #{tpu_custom_call.1} parent=5 // pred_check
        _
      $region30: #{tpu_custom_call.1} parent=5 // pred_check_branch
        %202 = sbr.rel (%p199) target = $region32
      $region31: #{tpu_custom_call.1} parent=5 // pred_region
        %s203 = ssub.s32 %s18, 1
        %p204 = scmp.lt.s32.totalorder %s23, 1
        %s205 = scalar_select %p204, %s23, 1
        %s206 = smul.addr %s205, 54
        %s207 = smul.addr %s206, 8
        %s208 = scalar_lea.vmem %s0, %s207
        %p209 = pneg %p44
        %p210 = pneg %p41
        %p211 = pneg %p65
        %p212 = pneg %p62
        %p213 = pneg %p86
        %p214 = pneg %p83
        %p215 = pneg %p112
        %p216 = pneg %p109
        %p217 = scmp.lt.s32.totalorder %s23, 1
        %s218 = scalar_select %p217, %s23, 1
        %s219 = smul.addr %s218, 32
        %s220 = smul.addr %s219, 8
        %s221 = scalar_lea.vmem %s3, %s220
        %p222 = pneg %p138
        %p223 = pneg %p135
        %s224 = sand.u32 %s125, 1
        %s225 = scalar_lea.sflag [#allocation3], %s224
        %s226 = sand.u32 %s125, 1
        %s227 = scalar_lea.vmem [#allocation2], %s226
        %p228 = pneg %p164
        %p229 = pneg %p161
        %s230 = sand.u32 %s151, 1
        %s231 = scalar_lea.sflag [#allocation5], %s230
        %s232 = sand.u32 %s151, 1
        %s233 = scalar_lea.vmem [#allocation4], %s232
        %p234 = scmp.lt.s32.totalorder %s23, 1
        %s235 = scalar_select %p234, %s23, 1
        %s236 = smul.addr %s235, 54
        %s237 = smul.addr %s236, 8
        %s238 = scalar_lea.vmem %s0, %s237
        %p239 = scmp.lt.s32.totalorder %s23, 1
        %s240 = scalar_select %p239, %s23, 1
        %s241 = smul.addr %s240, 32
        %s242 = smul.addr %s241, 8
        %s243 = scalar_lea.vmem %s3, %s242
        %v245 = vld [vmem:[%s238] sm:$0xff]
        %v246 = vld [vmem:[%s238 + $0x8] sm:$0xff]
        %v247 = vld [vmem:[%s238 + $0x10] sm:$0x3]
        %v248 = vld [vmem:[%s238 + $0x18] sm:$0xff]
        %v249 = vld [vmem:[%s238 + $0x20] sm:$0xff]
        %v250 = vld [vmem:[%s238 + $0x28] sm:$0x3]
        %v251 = vld [vmem:[%s238 + $0x30] sm:$0xff]
        %v252 = vld [vmem:[%s238 + $0x38] sm:$0xff]
        %v253 = vld [vmem:[%s238 + $0x40] sm:$0x3]
        %v254 = vld [vmem:[%s238 + $0x48] sm:$0xff]
        %v255 = vld [vmem:[%s238 + $0x50] sm:$0xff]
        %v256 = vld [vmem:[%s238 + $0x58] sm:$0x3]
        %v257 = vld [vmem:[%s238 + $0x60] sm:$0xff]
        %v258 = vld [vmem:[%s238 + $0x68] sm:$0xff]
        %v259 = vld [vmem:[%s238 + $0x70] sm:$0x3]
        %v260 = vld [vmem:[%s238 + $0x78] sm:$0xff]
        %v261 = vld [vmem:[%s238 + $0x80] sm:$0xff]
        %v262 = vld [vmem:[%s238 + $0x88] sm:$0x3]
        %v263 = vld [vmem:[%s238 + $0x90] sm:$0xff]
        %v264 = vld [vmem:[%s238 + $0x98] sm:$0xff]
        %v265 = vld [vmem:[%s238 + $0xa0] sm:$0x3]
        %v266 = vld [vmem:[%s238 + $0xa8] sm:$0xff]
        %v267 = vld [vmem:[%s238 + $0xb0] sm:$0xff]
        %v268 = vld [vmem:[%s238 + $0xb8] sm:$0x3]
        %v269 = vld [vmem:[%s238 + $0xc0] sm:$0xff]
        %v270 = vld [vmem:[%s238 + $0xc8] sm:$0xff]
        %v271 = vld [vmem:[%s238 + $0xd0] sm:$0x3]
        %v272 = vld [vmem:[%s238 + $0xd8] sm:$0xff]
        %v273 = vld [vmem:[%s238 + $0xe0] sm:$0xff]
        %v274 = vld [vmem:[%s238 + $0xe8] sm:$0x3]
        %v275 = vld [vmem:[%s238 + $0xf0] sm:$0xff]
        %v276 = vld [vmem:[%s238 + $0xf8] sm:$0xff]
        %v277 = vld [vmem:[%s238 + $0x100] sm:$0x3]
        %v278 = vld [vmem:[%s238 + $0x108] sm:$0xff]
        %v279 = vld [vmem:[%s238 + $0x110] sm:$0xff]
        %v280 = vld [vmem:[%s238 + $0x118] sm:$0x3]
        %v281 = vld [vmem:[%s238 + $0x120] sm:$0xff]
        %v282 = vld [vmem:[%s238 + $0x128] sm:$0xff]
        %v283 = vld [vmem:[%s238 + $0x130] sm:$0x3]
        %v284 = vld [vmem:[%s238 + $0x138] sm:$0xff]
        %v285 = vld [vmem:[%s238 + $0x140] sm:$0xff]
        %v286 = vld [vmem:[%s238 + $0x148] sm:$0x3]
        %v287 = vld [vmem:[%s238 + $0x150] sm:$0xff]
        %v288 = vld [vmem:[%s238 + $0x158] sm:$0xff]
        %v289 = vld [vmem:[%s238 + $0x160] sm:$0x3]
        %v290 = vld [vmem:[%s238 + $0x168] sm:$0xff]
        %v291 = vld [vmem:[%s238 + $0x170] sm:$0xff]
        %v292 = vld [vmem:[%s238 + $0x178] sm:$0x3]
        %v293 = vld [vmem:[%s238 + $0x180] sm:$0xff]
        %v294 = vld [vmem:[%s238 + $0x188] sm:$0xff]
        %v295 = vld [vmem:[%s238 + $0x190] sm:$0x3]
        %v296 = vld [vmem:[%s238 + $0x198] sm:$0xff]
        %v297 = vld [vmem:[%s238 + $0x1a0] sm:$0xff]
        %v298 = vld [vmem:[%s238 + $0x1a8] sm:$0x3]
        %v299 = vmax.f32 %v245, 0.0
        %v300 = vmax.f32 %v246, 0.0
        %v301 = vmax.f32 %v247, 0.0
        %v302 = vmax.f32 %v248, 0.0
        %v303 = vmax.f32 %v249, 0.0
        %v304 = vmax.f32 %v250, 0.0
        %v305 = vmax.f32 %v251, 0.0
        %v306 = vmax.f32 %v252, 0.0
        %v307 = vmax.f32 %v253, 0.0
        %v308 = vmax.f32 %v254, 0.0
        %v309 = vmax.f32 %v255, 0.0
        %v310 = vmax.f32 %v256, 0.0
        %v311 = vmax.f32 %v257, 0.0
        %v312 = vmax.f32 %v258, 0.0
        %v313 = vmax.f32 %v259, 0.0
        %v314 = vmax.f32 %v260, 0.0
        %v315 = vmax.f32 %v261, 0.0
        %v316 = vmax.f32 %v262, 0.0
        %v317 = vmax.f32 %v263, 0.0
        %v318 = vmax.f32 %v264, 0.0
        %v319 = vmax.f32 %v265, 0.0
        %v320 = vmax.f32 %v266, 0.0
        %v321 = vmax.f32 %v267, 0.0
        %v322 = vmax.f32 %v268, 0.0
        %v323 = vmax.f32 %v269, 0.0
        %v324 = vmax.f32 %v270, 0.0
        %v325 = vmax.f32 %v271, 0.0
        %v326 = vmax.f32 %v272, 0.0
        %v327 = vmax.f32 %v273, 0.0
        %v328 = vmax.f32 %v274, 0.0
        %v329 = vmax.f32 %v275, 0.0
        %v330 = vmax.f32 %v276, 0.0
        %v331 = vmax.f32 %v277, 0.0
        %v332 = vmax.f32 %v278, 0.0
        %v333 = vmax.f32 %v279, 0.0
        %v334 = vmax.f32 %v280, 0.0
        %v335 = vmax.f32 %v281, 0.0
        %v336 = vmax.f32 %v282, 0.0
        %v337 = vmax.f32 %v283, 0.0
        %v338 = vmax.f32 %v284, 0.0
        %v339 = vmax.f32 %v285, 0.0
        %v340 = vmax.f32 %v286, 0.0
        %v341 = vmax.f32 %v287, 0.0
        %v342 = vmax.f32 %v288, 0.0
        %v343 = vmax.f32 %v289, 0.0
        %v344 = vmax.f32 %v290, 0.0
        %v345 = vmax.f32 %v291, 0.0
        %v346 = vmax.f32 %v292, 0.0
        %v347 = vmax.f32 %v293, 0.0
        %v348 = vmax.f32 %v294, 0.0
        %v349 = vmax.f32 %v295, 0.0
        %v350 = vmax.f32 %v296, 0.0
        %v351 = vmax.f32 %v297, 0.0
        %v352 = vmax.f32 %v298, 0.0
        %v353 = vld [vmem:[%s1] sm:$0x7]
        %v354 = vld [vmem:[%s1 + $0x4] sm:$0x7]
        %v355 = vld [vmem:[%s1 + $0x8] sm:$0x7]
        %v356 = vperm.slane %v353, 0
        %v357 = vmul.f32 %v299, %v356
        %v358 = vmul.f32 %v300, %v356
        %v359 = vmul.f32 %v302, %v356
        %v360 = vmul.f32 %v303, %v356
        %v361 = vmul.f32 %v305, %v356
        %v362 = vmul.f32 %v306, %v356
        %v363 = vmul.f32 %v308, %v356
        %v364 = vmul.f32 %v309, %v356
        %v365 = vmul.f32 %v311, %v356
        %v366 = vmul.f32 %v312, %v356
        %v367 = vmul.f32 %v314, %v356
        %v368 = vmul.f32 %v315, %v356
        %v369 = vmul.f32 %v317, %v356
        %v370 = vmul.f32 %v318, %v356
        %v371 = vmul.f32 %v320, %v356
        %v372 = vmul.f32 %v321, %v356
        %v373 = vmul.f32 %v323, %v356
        %v374 = vmul.f32 %v324, %v356
        %v375 = vmul.f32 %v326, %v356
        %v376 = vmul.f32 %v327, %v356
        %v377 = vmul.f32 %v329, %v356
        %v378 = vmul.f32 %v330, %v356
        %v379 = vmul.f32 %v332, %v356
        %v380 = vmul.f32 %v333, %v356
        %v381 = vmul.f32 %v335, %v356
        %v382 = vmul.f32 %v336, %v356
        %v383 = vmul.f32 %v338, %v356
        %v384 = vmul.f32 %v339, %v356
        %v385 = vmul.f32 %v341, %v356
        %v386 = vmul.f32 %v342, %v356
        %v387 = vmul.f32 %v344, %v356
        %v388 = vmul.f32 %v345, %v356
        %v389 = vperm.slane %v354, 0
        %v390 = vmul.f32 %v302, %v389
        %v391 = vmul.f32 %v303, %v389
        %v392 = vmul.f32 %v305, %v389
        %v393 = vmul.f32 %v306, %v389
        %v394 = vmul.f32 %v308, %v389
        %v395 = vmul.f32 %v309, %v389
        %v396 = vmul.f32 %v311, %v389
        %v397 = vmul.f32 %v312, %v389
        %v398 = vmul.f32 %v314, %v389
        %v399 = vmul.f32 %v315, %v389
        %v400 = vmul.f32 %v317, %v389
        %v401 = vmul.f32 %v318, %v389
        %v402 = vmul.f32 %v320, %v389
        %v403 = vmul.f32 %v321, %v389
        %v404 = vmul.f32 %v323, %v389
        %v405 = vmul.f32 %v324, %v389
        %v406 = vmul.f32 %v326, %v389
        %v407 = vmul.f32 %v327, %v389
        %v408 = vmul.f32 %v329, %v389
        %v409 = vmul.f32 %v330, %v389
        %v410 = vmul.f32 %v332, %v389
        %v411 = vmul.f32 %v333, %v389
        %v412 = vmul.f32 %v335, %v389
        %v413 = vmul.f32 %v336, %v389
        %v414 = vmul.f32 %v338, %v389
        %v415 = vmul.f32 %v339, %v389
        %v416 = vmul.f32 %v341, %v389
        %v417 = vmul.f32 %v342, %v389
        %v418 = vmul.f32 %v344, %v389
        %v419 = vmul.f32 %v345, %v389
        %v420 = vmul.f32 %v347, %v389
        %v421 = vmul.f32 %v348, %v389
        %v422 = vadd.f32 %v357, %v390
        %v423 = vadd.f32 %v358, %v391
        %v424 = vadd.f32 %v359, %v392
        %v425 = vadd.f32 %v360, %v393
        %v426 = vadd.f32 %v361, %v394
        %v427 = vadd.f32 %v362, %v395
        %v428 = vadd.f32 %v363, %v396
        %v429 = vadd.f32 %v364, %v397
        %v430 = vadd.f32 %v365, %v398
        %v431 = vadd.f32 %v366, %v399
        %v432 = vadd.f32 %v367, %v400
        %v433 = vadd.f32 %v368, %v401
        %v434 = vadd.f32 %v369, %v402
        %v435 = vadd.f32 %v370, %v403
        %v436 = vadd.f32 %v371, %v404
        %v437 = vadd.f32 %v372, %v405
        %v438 = vadd.f32 %v373, %v406
        %v439 = vadd.f32 %v374, %v407
        %v440 = vadd.f32 %v375, %v408
        %v441 = vadd.f32 %v376, %v409
        %v442 = vadd.f32 %v377, %v410
        %v443 = vadd.f32 %v378, %v411
        %v444 = vadd.f32 %v379, %v412
        %v445 = vadd.f32 %v380, %v413
        %v446 = vadd.f32 %v381, %v414
        %v447 = vadd.f32 %v382, %v415
        %v448 = vadd.f32 %v383, %v416
        %v449 = vadd.f32 %v384, %v417
        %v450 = vadd.f32 %v385, %v418
        %v451 = vadd.f32 %v386, %v419
        %v452 = vadd.f32 %v387, %v420
        %v453 = vadd.f32 %v388, %v421
        %v454 = vperm.slane %v355, 0
        %v455 = vmul.f32 %v305, %v454
        %v456 = vmul.f32 %v306, %v454
        %v457 = vmul.f32 %v308, %v454
        %v458 = vmul.f32 %v309, %v454
        %v459 = vmul.f32 %v311, %v454
        %v460 = vmul.f32 %v312, %v454
        %v461 = vmul.f32 %v314, %v454
        %v462 = vmul.f32 %v315, %v454
        %v463 = vmul.f32 %v317, %v454
        %v464 = vmul.f32 %v318, %v454
        %v465 = vmul.f32 %v320, %v454
        %v466 = vmul.f32 %v321, %v454
        %v467 = vmul.f32 %v323, %v454
        %v468 = vmul.f32 %v324, %v454
        %v469 = vmul.f32 %v326, %v454
        %v470 = vmul.f32 %v327, %v454
        %v471 = vmul.f32 %v329, %v454
        %v472 = vmul.f32 %v330, %v454
        %v473 = vmul.f32 %v332, %v454
        %v474 = vmul.f32 %v333, %v454
        %v475 = vmul.f32 %v335, %v454
        %v476 = vmul.f32 %v336, %v454
        %v477 = vmul.f32 %v338, %v454
        %v478 = vmul.f32 %v339, %v454
        %v479 = vmul.f32 %v341, %v454
        %v480 = vmul.f32 %v342, %v454
        %v481 = vmul.f32 %v344, %v454
        %v482 = vmul.f32 %v345, %v454
        %v483 = vmul.f32 %v347, %v454
        %v484 = vmul.f32 %v348, %v454
        %v485 = vmul.f32 %v350, %v454
        %v486 = vmul.f32 %v351, %v454
        %v487 = vadd.f32 %v422, %v455
        %v488 = vadd.f32 %v423, %v456
        %v489 = vadd.f32 %v424, %v457
        %v490 = vadd.f32 %v425, %v458
        %v491 = vadd.f32 %v426, %v459
        %v492 = vadd.f32 %v427, %v460
        %v493 = vadd.f32 %v428, %v461
        %v494 = vadd.f32 %v429, %v462
        %v495 = vadd.f32 %v430, %v463
        %v496 = vadd.f32 %v431, %v464
        %v497 = vadd.f32 %v432, %v465
        %v498 = vadd.f32 %v433, %v466
        %v499 = vadd.f32 %v434, %v467
        %v500 = vadd.f32 %v435, %v468
        %v501 = vadd.f32 %v436, %v469
        %v502 = vadd.f32 %v437, %v470
        %v503 = vadd.f32 %v438, %v471
        %v504 = vadd.f32 %v439, %v472
        %v505 = vadd.f32 %v440, %v473
        %v506 = vadd.f32 %v441, %v474
        %v507 = vadd.f32 %v442, %v475
        %v508 = vadd.f32 %v443, %v476
        %v509 = vadd.f32 %v444, %v477
        %v510 = vadd.f32 %v445, %v478
        %v511 = vadd.f32 %v446, %v479
        %v512 = vadd.f32 %v447, %v480
        %v513 = vadd.f32 %v448, %v481
        %v514 = vadd.f32 %v449, %v482
        %v515 = vadd.f32 %v450, %v483
        %v516 = vadd.f32 %v451, %v484
        %v517 = vadd.f32 %v452, %v485
        %v518 = vadd.f32 %v453, %v486
        %v519 = vperm.slane %v353, 1
        %v520 = vmul.f32 %v299, %v519
        %v521 = vmul.f32 %v300, %v519
        %v522 = vmul.f32 %v301, %v519
        %v523 = vmul.f32 %v302, %v519
        %v524 = vmul.f32 %v303, %v519
        %v525 = vmul.f32 %v304, %v519
        %v526 = vmul.f32 %v305, %v519
        %v527 = vmul.f32 %v306, %v519
        %v528 = vmul.f32 %v307, %v519
        %v529 = vmul.f32 %v308, %v519
        %v530 = vmul.f32 %v309, %v519
        %v531 = vmul.f32 %v310, %v519
        %v532 = vmul.f32 %v311, %v519
        %v533 = vmul.f32 %v312, %v519
        %v534 = vmul.f32 %v313, %v519
        %v535 = vmul.f32 %v314, %v519
        %v536 = vmul.f32 %v315, %v519
        %v537 = vmul.f32 %v316, %v519
        %v538 = vmul.f32 %v317, %v519
        %v539 = vmul.f32 %v318, %v519
        %v540 = vmul.f32 %v319, %v519
        %v541 = vmul.f32 %v320, %v519
        %v542 = vmul.f32 %v321, %v519
        %v543 = vmul.f32 %v322, %v519
        %v544 = vmul.f32 %v323, %v519
        %v545 = vmul.f32 %v324, %v519
        %v546 = vmul.f32 %v325, %v519
        %v547 = vmul.f32 %v326, %v519
        %v548 = vmul.f32 %v327, %v519
        %v549 = vmul.f32 %v328, %v519
        %v550 = vmul.f32 %v329, %v519
        %v551 = vmul.f32 %v330, %v519
        %v552 = vmul.f32 %v331, %v519
        %v553 = vmul.f32 %v332, %v519
        %v554 = vmul.f32 %v333, %v519
        %v555 = vmul.f32 %v334, %v519
        %v556 = vmul.f32 %v335, %v519
        %v557 = vmul.f32 %v336, %v519
        %v558 = vmul.f32 %v337, %v519
        %v559 = vmul.f32 %v338, %v519
        %v560 = vmul.f32 %v339, %v519
        %v561 = vmul.f32 %v340, %v519
        %v562 = vmul.f32 %v341, %v519
        %v563 = vmul.f32 %v342, %v519
        %v564 = vmul.f32 %v343, %v519
        %v565 = vmul.f32 %v344, %v519
        %v566 = vmul.f32 %v345, %v519
        %v567 = vmul.f32 %v346, %v519
        %vm616 = vcmask 1046528
        %v617 = vrot.slane %v520, 1
        %v618 = vrot.slane %v521, 1
        %v619 = vsel %vm616, %v617, %v618
        %v620 = vrot.slane %v522, 1
        %v621 = vsel %vm616, %v618, %v620
        %v622 = vrot.slane %v523, 1
        %v623 = vrot.slane %v524, 1
        %v624 = vsel %vm616, %v622, %v623
        %v625 = vrot.slane %v525, 1
        %v626 = vsel %vm616, %v623, %v625
        %v627 = vrot.slane %v526, 1
        %v628 = vrot.slane %v527, 1
        %v629 = vsel %vm616, %v627, %v628
        %v630 = vrot.slane %v528, 1
        %v631 = vsel %vm616, %v628, %v630
        %v632 = vrot.slane %v529, 1
        %v633 = vrot.slane %v530, 1
        %v634 = vsel %vm616, %v632, %v633
        %v635 = vrot.slane %v531, 1
        %v636 = vsel %vm616, %v633, %v635
        %v637 = vrot.slane %v532, 1
        %v638 = vrot.slane %v533, 1
        %v639 = vsel %vm616, %v637, %v638
        %v640 = vrot.slane %v534, 1
        %v641 = vsel %vm616, %v638, %v640
        %v642 = vrot.slane %v535, 1
        %v643 = vrot.slane %v536, 1
        %v644 = vsel %vm616, %v642, %v643
        %v645 = vrot.slane %v537, 1
        %v646 = vsel %vm616, %v643, %v645
        %v647 = vrot.slane %v538, 1
        %v648 = vrot.slane %v539, 1
        %v649 = vsel %vm616, %v647, %v648
        %v650 = vrot.slane %v540, 1
        %v651 = vsel %vm616, %v648, %v650
        %v652 = vrot.slane %v541, 1
        %v653 = vrot.slane %v542, 1
        %v654 = vsel %vm616, %v652, %v653
        %v655 = vrot.slane %v543, 1
        %v656 = vsel %vm616, %v653, %v655
        %v657 = vrot.slane %v544, 1
        %v658 = vrot.slane %v545, 1
        %v659 = vsel %vm616, %v657, %v658
        %v660 = vrot.slane %v546, 1
        %v661 = vsel %vm616, %v658, %v660
        %v662 = vrot.slane %v547, 1
        %v663 = vrot.slane %v548, 1
        %v664 = vsel %vm616, %v662, %v663
        %v665 = vrot.slane %v549, 1
        %v666 = vsel %vm616, %v663, %v665
        %v667 = vrot.slane %v550, 1
        %v668 = vrot.slane %v551, 1
        %v669 = vsel %vm616, %v667, %v668
        %v670 = vrot.slane %v552, 1
        %v671 = vsel %vm616, %v668, %v670
        %v672 = vrot.slane %v553, 1
        %v673 = vrot.slane %v554, 1
        %v674 = vsel %vm616, %v672, %v673
        %v675 = vrot.slane %v555, 1
        %v676 = vsel %vm616, %v673, %v675
        %v677 = vrot.slane %v556, 1
        %v678 = vrot.slane %v557, 1
        %v679 = vsel %vm616, %v677, %v678
        %v680 = vrot.slane %v558, 1
        %v681 = vsel %vm616, %v678, %v680
        %v682 = vrot.slane %v559, 1
        %v683 = vrot.slane %v560, 1
        %v684 = vsel %vm616, %v682, %v683
        %v685 = vrot.slane %v561, 1
        %v686 = vsel %vm616, %v683, %v685
        %v687 = vrot.slane %v562, 1
        %v688 = vrot.slane %v563, 1
        %v689 = vsel %vm616, %v687, %v688
        %v690 = vrot.slane %v564, 1
        %v691 = vsel %vm616, %v688, %v690
        %v692 = vrot.slane %v565, 1
        %v693 = vrot.slane %v566, 1
        %v694 = vsel %vm616, %v692, %v693
        %v695 = vrot.slane %v567, 1
        %v696 = vsel %vm616, %v693, %v695
        %v729 = vadd.f32 %v487, %v619
        %v730 = vadd.f32 %v488, %v621
        %v731 = vadd.f32 %v489, %v624
        %v732 = vadd.f32 %v490, %v626
        %v733 = vadd.f32 %v491, %v629
        %v734 = vadd.f32 %v492, %v631
        %v735 = vadd.f32 %v493, %v634
        %v736 = vadd.f32 %v494, %v636
        %v737 = vadd.f32 %v495, %v639
        %v738 = vadd.f32 %v496, %v641
        %v739 = vadd.f32 %v497, %v644
        %v740 = vadd.f32 %v498, %v646
        %v741 = vadd.f32 %v499, %v649
        %v742 = vadd.f32 %v500, %v651
        %v743 = vadd.f32 %v501, %v654
        %v744 = vadd.f32 %v502, %v656
        %v745 = vadd.f32 %v503, %v659
        %v746 = vadd.f32 %v504, %v661
        %v747 = vadd.f32 %v505, %v664
        %v748 = vadd.f32 %v506, %v666
        %v749 = vadd.f32 %v507, %v669
        %v750 = vadd.f32 %v508, %v671
        %v751 = vadd.f32 %v509, %v674
        %v752 = vadd.f32 %v510, %v676
        %v753 = vadd.f32 %v511, %v679
        %v754 = vadd.f32 %v512, %v681
        %v755 = vadd.f32 %v513, %v684
        %v756 = vadd.f32 %v514, %v686
        %v757 = vadd.f32 %v515, %v689
        %v758 = vadd.f32 %v516, %v691
        %v759 = vadd.f32 %v517, %v694
        %v760 = vadd.f32 %v518, %v696
        %v761 = vperm.slane %v354, 1
        %v762 = vmul.f32 %v302, %v761
        %v763 = vmul.f32 %v303, %v761
        %v764 = vmul.f32 %v304, %v761
        %v765 = vmul.f32 %v305, %v761
        %v766 = vmul.f32 %v306, %v761
        %v767 = vmul.f32 %v307, %v761
        %v768 = vmul.f32 %v308, %v761
        %v769 = vmul.f32 %v309, %v761
        %v770 = vmul.f32 %v310, %v761
        %v771 = vmul.f32 %v311, %v761
        %v772 = vmul.f32 %v312, %v761
        %v773 = vmul.f32 %v313, %v761
        %v774 = vmul.f32 %v314, %v761
        %v775 = vmul.f32 %v315, %v761
        %v776 = vmul.f32 %v316, %v761
        %v777 = vmul.f32 %v317, %v761
        %v778 = vmul.f32 %v318, %v761
        %v779 = vmul.f32 %v319, %v761
        %v780 = vmul.f32 %v320, %v761
        %v781 = vmul.f32 %v321, %v761
        %v782 = vmul.f32 %v322, %v761
        %v783 = vmul.f32 %v323, %v761
        %v784 = vmul.f32 %v324, %v761
        %v785 = vmul.f32 %v325, %v761
        %v786 = vmul.f32 %v326, %v761
        %v787 = vmul.f32 %v327, %v761
        %v788 = vmul.f32 %v328, %v761
        %v789 = vmul.f32 %v329, %v761
        %v790 = vmul.f32 %v330, %v761
        %v791 = vmul.f32 %v331, %v761
        %v792 = vmul.f32 %v332, %v761
        %v793 = vmul.f32 %v333, %v761
        %v794 = vmul.f32 %v334, %v761
        %v795 = vmul.f32 %v335, %v761
        %v796 = vmul.f32 %v336, %v761
        %v797 = vmul.f32 %v337, %v761
        %v798 = vmul.f32 %v338, %v761
        %v799 = vmul.f32 %v339, %v761
        %v800 = vmul.f32 %v340, %v761
        %v801 = vmul.f32 %v341, %v761
        %v802 = vmul.f32 %v342, %v761
        %v803 = vmul.f32 %v343, %v761
        %v804 = vmul.f32 %v344, %v761
        %v805 = vmul.f32 %v345, %v761
        %v806 = vmul.f32 %v346, %v761
        %v807 = vmul.f32 %v347, %v761
        %v808 = vmul.f32 %v348, %v761
        %v809 = vmul.f32 %v349, %v761
        %v858 = vrot.slane %v762, 1
        %v859 = vrot.slane %v763, 1
        %v860 = vsel %vm616, %v858, %v859
        %v861 = vrot.slane %v764, 1
        %v862 = vsel %vm616, %v859, %v861
        %v863 = vrot.slane %v765, 1
        %v864 = vrot.slane %v766, 1
        %v865 = vsel %vm616, %v863, %v864
        %v866 = vrot.slane %v767, 1
        %v867 = vsel %vm616, %v864, %v866
        %v868 = vrot.slane %v768, 1
        %v869 = vrot.slane %v769, 1
        %v870 = vsel %vm616, %v868, %v869
        %v871 = vrot.slane %v770, 1
        %v872 = vsel %vm616, %v869, %v871
        %v873 = vrot.slane %v771, 1
        %v874 = vrot.slane %v772, 1
        %v875 = vsel %vm616, %v873, %v874
        %v876 = vrot.slane %v773, 1
        %v877 = vsel %vm616, %v874, %v876
        %v878 = vrot.slane %v774, 1
        %v879 = vrot.slane %v775, 1
        %v880 = vsel %vm616, %v878, %v879
        %v881 = vrot.slane %v776, 1
        %v882 = vsel %vm616, %v879, %v881
        %v883 = vrot.slane %v777, 1
        %v884 = vrot.slane %v778, 1
        %v885 = vsel %vm616, %v883, %v884
        %v886 = vrot.slane %v779, 1
        %v887 = vsel %vm616, %v884, %v886
        %v888 = vrot.slane %v780, 1
        %v889 = vrot.slane %v781, 1
        %v890 = vsel %vm616, %v888, %v889
        %v891 = vrot.slane %v782, 1
        %v892 = vsel %vm616, %v889, %v891
        %v893 = vrot.slane %v783, 1
        %v894 = vrot.slane %v784, 1
        %v895 = vsel %vm616, %v893, %v894
        %v896 = vrot.slane %v785, 1
        %v897 = vsel %vm616, %v894, %v896
        %v898 = vrot.slane %v786, 1
        %v899 = vrot.slane %v787, 1
        %v900 = vsel %vm616, %v898, %v899
        %v901 = vrot.slane %v788, 1
        %v902 = vsel %vm616, %v899, %v901
        %v903 = vrot.slane %v789, 1
        %v904 = vrot.slane %v790, 1
        %v905 = vsel %vm616, %v903, %v904
        %v906 = vrot.slane %v791, 1
        %v907 = vsel %vm616, %v904, %v906
        %v908 = vrot.slane %v792, 1
        %v909 = vrot.slane %v793, 1
        %v910 = vsel %vm616, %v908, %v909
        %v911 = vrot.slane %v794, 1
        %v912 = vsel %vm616, %v909, %v911
        %v913 = vrot.slane %v795, 1
        %v914 = vrot.slane %v796, 1
        %v915 = vsel %vm616, %v913, %v914
        %v916 = vrot.slane %v797, 1
        %v917 = vsel %vm616, %v914, %v916
        %v918 = vrot.slane %v798, 1
        %v919 = vrot.slane %v799, 1
        %v920 = vsel %vm616, %v918, %v919
        %v921 = vrot.slane %v800, 1
        %v922 = vsel %vm616, %v919, %v921
        %v923 = vrot.slane %v801, 1
        %v924 = vrot.slane %v802, 1
        %v925 = vsel %vm616, %v923, %v924
        %v926 = vrot.slane %v803, 1
        %v927 = vsel %vm616, %v924, %v926
        %v928 = vrot.slane %v804, 1
        %v929 = vrot.slane %v805, 1
        %v930 = vsel %vm616, %v928, %v929
        %v931 = vrot.slane %v806, 1
        %v932 = vsel %vm616, %v929, %v931
        %v933 = vrot.slane %v807, 1
        %v934 = vrot.slane %v808, 1
        %v935 = vsel %vm616, %v933, %v934
        %v936 = vrot.slane %v809, 1
        %v937 = vsel %vm616, %v934, %v936
        %v970 = vadd.f32 %v729, %v860
        %v971 = vadd.f32 %v730, %v862
        %v972 = vadd.f32 %v731, %v865
        %v973 = vadd.f32 %v732, %v867
        %v974 = vadd.f32 %v733, %v870
        %v975 = vadd.f32 %v734, %v872
        %v976 = vadd.f32 %v735, %v875
        %v977 = vadd.f32 %v736, %v877
        %v978 = vadd.f32 %v737, %v880
        %v979 = vadd.f32 %v738, %v882
        %v980 = vadd.f32 %v739, %v885
        %v981 = vadd.f32 %v740, %v887
        %v982 = vadd.f32 %v741, %v890
        %v983 = vadd.f32 %v742, %v892
        %v984 = vadd.f32 %v743, %v895
        %v985 = vadd.f32 %v744, %v897
        %v986 = vadd.f32 %v745, %v900
        %v987 = vadd.f32 %v746, %v902
        %v988 = vadd.f32 %v747, %v905
        %v989 = vadd.f32 %v748, %v907
        %v990 = vadd.f32 %v749, %v910
        %v991 = vadd.f32 %v750, %v912
        %v992 = vadd.f32 %v751, %v915
        %v993 = vadd.f32 %v752, %v917
        %v994 = vadd.f32 %v753, %v920
        %v995 = vadd.f32 %v754, %v922
        %v996 = vadd.f32 %v755, %v925
        %v997 = vadd.f32 %v756, %v927
        %v998 = vadd.f32 %v757, %v930
        %v999 = vadd.f32 %v758, %v932
        %v1000 = vadd.f32 %v759, %v935
        %v1001 = vadd.f32 %v760, %v937
        %v1002 = vperm.slane %v355, 1
        %v1003 = vmul.f32 %v305, %v1002
        %v1004 = vmul.f32 %v306, %v1002
        %v1005 = vmul.f32 %v307, %v1002
        %v1006 = vmul.f32 %v308, %v1002
        %v1007 = vmul.f32 %v309, %v1002
        %v1008 = vmul.f32 %v310, %v1002
        %v1009 = vmul.f32 %v311, %v1002
        %v1010 = vmul.f32 %v312, %v1002
        %v1011 = vmul.f32 %v313, %v1002
        %v1012 = vmul.f32 %v314, %v1002
        %v1013 = vmul.f32 %v315, %v1002
        %v1014 = vmul.f32 %v316, %v1002
        %v1015 = vmul.f32 %v317, %v1002
        %v1016 = vmul.f32 %v318, %v1002
        %v1017 = vmul.f32 %v319, %v1002
        %v1018 = vmul.f32 %v320, %v1002
        %v1019 = vmul.f32 %v321, %v1002
        %v1020 = vmul.f32 %v322, %v1002
        %v1021 = vmul.f32 %v323, %v1002
        %v1022 = vmul.f32 %v324, %v1002
        %v1023 = vmul.f32 %v325, %v1002
        %v1024 = vmul.f32 %v326, %v1002
        %v1025 = vmul.f32 %v327, %v1002
        %v1026 = vmul.f32 %v328, %v1002
        %v1027 = vmul.f32 %v329, %v1002
        %v1028 = vmul.f32 %v330, %v1002
        %v1029 = vmul.f32 %v331, %v1002
        %v1030 = vmul.f32 %v332, %v1002
        %v1031 = vmul.f32 %v333, %v1002
        %v1032 = vmul.f32 %v334, %v1002
        %v1033 = vmul.f32 %v335, %v1002
        %v1034 = vmul.f32 %v336, %v1002
        %v1035 = vmul.f32 %v337, %v1002
        %v1036 = vmul.f32 %v338, %v1002
        %v1037 = vmul.f32 %v339, %v1002
        %v1038 = vmul.f32 %v340, %v1002
        %v1039 = vmul.f32 %v341, %v1002
        %v1040 = vmul.f32 %v342, %v1002
        %v1041 = vmul.f32 %v343, %v1002
        %v1042 = vmul.f32 %v344, %v1002
        %v1043 = vmul.f32 %v345, %v1002
        %v1044 = vmul.f32 %v346, %v1002
        %v1045 = vmul.f32 %v347, %v1002
        %v1046 = vmul.f32 %v348, %v1002
        %v1047 = vmul.f32 %v349, %v1002
        %v1048 = vmul.f32 %v350, %v1002
        %v1049 = vmul.f32 %v351, %v1002
        %v1050 = vmul.f32 %v352, %v1002
        %v1099 = vrot.slane %v1003, 1
        %v1100 = vrot.slane %v1004, 1
        %v1101 = vsel %vm616, %v1099, %v1100
        %v1102 = vrot.slane %v1005, 1
        %v1103 = vsel %vm616, %v1100, %v1102
        %v1104 = vrot.slane %v1006, 1
        %v1105 = vrot.slane %v1007, 1
        %v1106 = vsel %vm616, %v1104, %v1105
        %v1107 = vrot.slane %v1008, 1
        %v1108 = vsel %vm616, %v1105, %v1107
        %v1109 = vrot.slane %v1009, 1
        %v1110 = vrot.slane %v1010, 1
        %v1111 = vsel %vm616, %v1109, %v1110
        %v1112 = vrot.slane %v1011, 1
        %v1113 = vsel %vm616, %v1110, %v1112
        %v1114 = vrot.slane %v1012, 1
        %v1115 = vrot.slane %v1013, 1
        %v1116 = vsel %vm616, %v1114, %v1115
        %v1117 = vrot.slane %v1014, 1
        %v1118 = vsel %vm616, %v1115, %v1117
        %v1119 = vrot.slane %v1015, 1
        %v1120 = vrot.slane %v1016, 1
        %v1121 = vsel %vm616, %v1119, %v1120
        %v1122 = vrot.slane %v1017, 1
        %v1123 = vsel %vm616, %v1120, %v1122
        %v1124 = vrot.slane %v1018, 1
        %v1125 = vrot.slane %v1019, 1
        %v1126 = vsel %vm616, %v1124, %v1125
        %v1127 = vrot.slane %v1020, 1
        %v1128 = vsel %vm616, %v1125, %v1127
        %v1129 = vrot.slane %v1021, 1
        %v1130 = vrot.slane %v1022, 1
        %v1131 = vsel %vm616, %v1129, %v1130
        %v1132 = vrot.slane %v1023, 1
        %v1133 = vsel %vm616, %v1130, %v1132
        %v1134 = vrot.slane %v1024, 1
        %v1135 = vrot.slane %v1025, 1
        %v1136 = vsel %vm616, %v1134, %v1135
        %v1137 = vrot.slane %v1026, 1
        %v1138 = vsel %vm616, %v1135, %v1137
        %v1139 = vrot.slane %v1027, 1
        %v1140 = vrot.slane %v1028, 1
        %v1141 = vsel %vm616, %v1139, %v1140
        %v1142 = vrot.slane %v1029, 1
        %v1143 = vsel %vm616, %v1140, %v1142
        %v1144 = vrot.slane %v1030, 1
        %v1145 = vrot.slane %v1031, 1
        %v1146 = vsel %vm616, %v1144, %v1145
        %v1147 = vrot.slane %v1032, 1
        %v1148 = vsel %vm616, %v1145, %v1147
        %v1149 = vrot.slane %v1033, 1
        %v1150 = vrot.slane %v1034, 1
        %v1151 = vsel %vm616, %v1149, %v1150
        %v1152 = vrot.slane %v1035, 1
        %v1153 = vsel %vm616, %v1150, %v1152
        %v1154 = vrot.slane %v1036, 1
        %v1155 = vrot.slane %v1037, 1
        %v1156 = vsel %vm616, %v1154, %v1155
        %v1157 = vrot.slane %v1038, 1
        %v1158 = vsel %vm616, %v1155, %v1157
        %v1159 = vrot.slane %v1039, 1
        %v1160 = vrot.slane %v1040, 1
        %v1161 = vsel %vm616, %v1159, %v1160
        %v1162 = vrot.slane %v1041, 1
        %v1163 = vsel %vm616, %v1160, %v1162
        %v1164 = vrot.slane %v1042, 1
        %v1165 = vrot.slane %v1043, 1
        %v1166 = vsel %vm616, %v1164, %v1165
        %v1167 = vrot.slane %v1044, 1
        %v1168 = vsel %vm616, %v1165, %v1167
        %v1169 = vrot.slane %v1045, 1
        %v1170 = vrot.slane %v1046, 1
        %v1171 = vsel %vm616, %v1169, %v1170
        %v1172 = vrot.slane %v1047, 1
        %v1173 = vsel %vm616, %v1170, %v1172
        %v1174 = vrot.slane %v1048, 1
        %v1175 = vrot.slane %v1049, 1
        %v1176 = vsel %vm616, %v1174, %v1175
        %v1177 = vrot.slane %v1050, 1
        %v1178 = vsel %vm616, %v1175, %v1177
        %v1211 = vadd.f32 %v970, %v1101
        %v1212 = vadd.f32 %v971, %v1103
        %v1213 = vadd.f32 %v972, %v1106
        %v1214 = vadd.f32 %v973, %v1108
        %v1215 = vadd.f32 %v974, %v1111
        %v1216 = vadd.f32 %v975, %v1113
        %v1217 = vadd.f32 %v976, %v1116
        %v1218 = vadd.f32 %v977, %v1118
        %v1219 = vadd.f32 %v978, %v1121
        %v1220 = vadd.f32 %v979, %v1123
        %v1221 = vadd.f32 %v980, %v1126
        %v1222 = vadd.f32 %v981, %v1128
        %v1223 = vadd.f32 %v982, %v1131
        %v1224 = vadd.f32 %v983, %v1133
        %v1225 = vadd.f32 %v984, %v1136
        %v1226 = vadd.f32 %v985, %v1138
        %v1227 = vadd.f32 %v986, %v1141
        %v1228 = vadd.f32 %v987, %v1143
        %v1229 = vadd.f32 %v988, %v1146
        %v1230 = vadd.f32 %v989, %v1148
        %v1231 = vadd.f32 %v990, %v1151
        %v1232 = vadd.f32 %v991, %v1153
        %v1233 = vadd.f32 %v992, %v1156
        %v1234 = vadd.f32 %v993, %v1158
        %v1235 = vadd.f32 %v994, %v1161
        %v1236 = vadd.f32 %v995, %v1163
        %v1237 = vadd.f32 %v996, %v1166
        %v1238 = vadd.f32 %v997, %v1168
        %v1239 = vadd.f32 %v998, %v1171
        %v1240 = vadd.f32 %v999, %v1173
        %v1241 = vadd.f32 %v1000, %v1176
        %v1242 = vadd.f32 %v1001, %v1178
        %v1243 = vperm.slane %v353, 2
        %v1244 = vmul.f32 %v299, %v1243
        %v1245 = vmul.f32 %v300, %v1243
        %v1246 = vmul.f32 %v301, %v1243
        %v1247 = vmul.f32 %v302, %v1243
        %v1248 = vmul.f32 %v303, %v1243
        %v1249 = vmul.f32 %v304, %v1243
        %v1250 = vmul.f32 %v305, %v1243
        %v1251 = vmul.f32 %v306, %v1243
        %v1252 = vmul.f32 %v307, %v1243
        %v1253 = vmul.f32 %v308, %v1243
        %v1254 = vmul.f32 %v309, %v1243
        %v1255 = vmul.f32 %v310, %v1243
        %v1256 = vmul.f32 %v311, %v1243
        %v1257 = vmul.f32 %v312, %v1243
        %v1258 = vmul.f32 %v313, %v1243
        %v1259 = vmul.f32 %v314, %v1243
        %v1260 = vmul.f32 %v315, %v1243
        %v1261 = vmul.f32 %v316, %v1243
        %v1262 = vmul.f32 %v317, %v1243
        %v1263 = vmul.f32 %v318, %v1243
        %v1264 = vmul.f32 %v319, %v1243
        %v1265 = vmul.f32 %v320, %v1243
        %v1266 = vmul.f32 %v321, %v1243
        %v1267 = vmul.f32 %v322, %v1243
        %v1268 = vmul.f32 %v323, %v1243
        %v1269 = vmul.f32 %v324, %v1243
        %v1270 = vmul.f32 %v325, %v1243
        %v1271 = vmul.f32 %v326, %v1243
        %v1272 = vmul.f32 %v327, %v1243
        %v1273 = vmul.f32 %v328, %v1243
        %v1274 = vmul.f32 %v329, %v1243
        %v1275 = vmul.f32 %v330, %v1243
        %v1276 = vmul.f32 %v331, %v1243
        %v1277 = vmul.f32 %v332, %v1243
        %v1278 = vmul.f32 %v333, %v1243
        %v1279 = vmul.f32 %v334, %v1243
        %v1280 = vmul.f32 %v335, %v1243
        %v1281 = vmul.f32 %v336, %v1243
        %v1282 = vmul.f32 %v337, %v1243
        %v1283 = vmul.f32 %v338, %v1243
        %v1284 = vmul.f32 %v339, %v1243
        %v1285 = vmul.f32 %v340, %v1243
        %v1286 = vmul.f32 %v341, %v1243
        %v1287 = vmul.f32 %v342, %v1243
        %v1288 = vmul.f32 %v343, %v1243
        %v1289 = vmul.f32 %v344, %v1243
        %v1290 = vmul.f32 %v345, %v1243
        %v1291 = vmul.f32 %v346, %v1243
        %vm1340 = vcmask 1045504
        %v1341 = vrot.slane %v1244, 2
        %v1342 = vrot.slane %v1245, 2
        %v1343 = vsel %vm1340, %v1341, %v1342
        %v1344 = vrot.slane %v1246, 2
        %v1345 = vsel %vm1340, %v1342, %v1344
        %v1346 = vrot.slane %v1247, 2
        %v1347 = vrot.slane %v1248, 2
        %v1348 = vsel %vm1340, %v1346, %v1347
        %v1349 = vrot.slane %v1249, 2
        %v1350 = vsel %vm1340, %v1347, %v1349
        %v1351 = vrot.slane %v1250, 2
        %v1352 = vrot.slane %v1251, 2
        %v1353 = vsel %vm1340, %v1351, %v1352
        %v1354 = vrot.slane %v1252, 2
        %v1355 = vsel %vm1340, %v1352, %v1354
        %v1356 = vrot.slane %v1253, 2
        %v1357 = vrot.slane %v1254, 2
        %v1358 = vsel %vm1340, %v1356, %v1357
        %v1359 = vrot.slane %v1255, 2
        %v1360 = vsel %vm1340, %v1357, %v1359
        %v1361 = vrot.slane %v1256, 2
        %v1362 = vrot.slane %v1257, 2
        %v1363 = vsel %vm1340, %v1361, %v1362
        %v1364 = vrot.slane %v1258, 2
        %v1365 = vsel %vm1340, %v1362, %v1364
        %v1366 = vrot.slane %v1259, 2
        %v1367 = vrot.slane %v1260, 2
        %v1368 = vsel %vm1340, %v1366, %v1367
        %v1369 = vrot.slane %v1261, 2
        %v1370 = vsel %vm1340, %v1367, %v1369
        %v1371 = vrot.slane %v1262, 2
        %v1372 = vrot.slane %v1263, 2
        %v1373 = vsel %vm1340, %v1371, %v1372
        %v1374 = vrot.slane %v1264, 2
        %v1375 = vsel %vm1340, %v1372, %v1374
        %v1376 = vrot.slane %v1265, 2
        %v1377 = vrot.slane %v1266, 2
        %v1378 = vsel %vm1340, %v1376, %v1377
        %v1379 = vrot.slane %v1267, 2
        %v1380 = vsel %vm1340, %v1377, %v1379
        %v1381 = vrot.slane %v1268, 2
        %v1382 = vrot.slane %v1269, 2
        %v1383 = vsel %vm1340, %v1381, %v1382
        %v1384 = vrot.slane %v1270, 2
        %v1385 = vsel %vm1340, %v1382, %v1384
        %v1386 = vrot.slane %v1271, 2
        %v1387 = vrot.slane %v1272, 2
        %v1388 = vsel %vm1340, %v1386, %v1387
        %v1389 = vrot.slane %v1273, 2
        %v1390 = vsel %vm1340, %v1387, %v1389
        %v1391 = vrot.slane %v1274, 2
        %v1392 = vrot.slane %v1275, 2
        %v1393 = vsel %vm1340, %v1391, %v1392
        %v1394 = vrot.slane %v1276, 2
        %v1395 = vsel %vm1340, %v1392, %v1394
        %v1396 = vrot.slane %v1277, 2
        %v1397 = vrot.slane %v1278, 2
        %v1398 = vsel %vm1340, %v1396, %v1397
        %v1399 = vrot.slane %v1279, 2
        %v1400 = vsel %vm1340, %v1397, %v1399
        %v1401 = vrot.slane %v1280, 2
        %v1402 = vrot.slane %v1281, 2
        %v1403 = vsel %vm1340, %v1401, %v1402
        %v1404 = vrot.slane %v1282, 2
        %v1405 = vsel %vm1340, %v1402, %v1404
        %v1406 = vrot.slane %v1283, 2
        %v1407 = vrot.slane %v1284, 2
        %v1408 = vsel %vm1340, %v1406, %v1407
        %v1409 = vrot.slane %v1285, 2
        %v1410 = vsel %vm1340, %v1407, %v1409
        %v1411 = vrot.slane %v1286, 2
        %v1412 = vrot.slane %v1287, 2
        %v1413 = vsel %vm1340, %v1411, %v1412
        %v1414 = vrot.slane %v1288, 2
        %v1415 = vsel %vm1340, %v1412, %v1414
        %v1416 = vrot.slane %v1289, 2
        %v1417 = vrot.slane %v1290, 2
        %v1418 = vsel %vm1340, %v1416, %v1417
        %v1419 = vrot.slane %v1291, 2
        %v1420 = vsel %vm1340, %v1417, %v1419
        %v1453 = vadd.f32 %v1211, %v1343
        %v1454 = vadd.f32 %v1212, %v1345
        %v1455 = vadd.f32 %v1213, %v1348
        %v1456 = vadd.f32 %v1214, %v1350
        %v1457 = vadd.f32 %v1215, %v1353
        %v1458 = vadd.f32 %v1216, %v1355
        %v1459 = vadd.f32 %v1217, %v1358
        %v1460 = vadd.f32 %v1218, %v1360
        %v1461 = vadd.f32 %v1219, %v1363
        %v1462 = vadd.f32 %v1220, %v1365
        %v1463 = vadd.f32 %v1221, %v1368
        %v1464 = vadd.f32 %v1222, %v1370
        %v1465 = vadd.f32 %v1223, %v1373
        %v1466 = vadd.f32 %v1224, %v1375
        %v1467 = vadd.f32 %v1225, %v1378
        %v1468 = vadd.f32 %v1226, %v1380
        %v1469 = vadd.f32 %v1227, %v1383
        %v1470 = vadd.f32 %v1228, %v1385
        %v1471 = vadd.f32 %v1229, %v1388
        %v1472 = vadd.f32 %v1230, %v1390
        %v1473 = vadd.f32 %v1231, %v1393
        %v1474 = vadd.f32 %v1232, %v1395
        %v1475 = vadd.f32 %v1233, %v1398
        %v1476 = vadd.f32 %v1234, %v1400
        %v1477 = vadd.f32 %v1235, %v1403
        %v1478 = vadd.f32 %v1236, %v1405
        %v1479 = vadd.f32 %v1237, %v1408
        %v1480 = vadd.f32 %v1238, %v1410
        %v1481 = vadd.f32 %v1239, %v1413
        %v1482 = vadd.f32 %v1240, %v1415
        %v1483 = vadd.f32 %v1241, %v1418
        %v1484 = vadd.f32 %v1242, %v1420
        %v1485 = vperm.slane %v354, 2
        %v1486 = vmul.f32 %v302, %v1485
        %v1487 = vmul.f32 %v303, %v1485
        %v1488 = vmul.f32 %v304, %v1485
        %v1489 = vmul.f32 %v305, %v1485
        %v1490 = vmul.f32 %v306, %v1485
        %v1491 = vmul.f32 %v307, %v1485
        %v1492 = vmul.f32 %v308, %v1485
        %v1493 = vmul.f32 %v309, %v1485
        %v1494 = vmul.f32 %v310, %v1485
        %v1495 = vmul.f32 %v311, %v1485
        %v1496 = vmul.f32 %v312, %v1485
        %v1497 = vmul.f32 %v313, %v1485
        %v1498 = vmul.f32 %v314, %v1485
        %v1499 = vmul.f32 %v315, %v1485
        %v1500 = vmul.f32 %v316, %v1485
        %v1501 = vmul.f32 %v317, %v1485
        %v1502 = vmul.f32 %v318, %v1485
        %v1503 = vmul.f32 %v319, %v1485
        %v1504 = vmul.f32 %v320, %v1485
        %v1505 = vmul.f32 %v321, %v1485
        %v1506 = vmul.f32 %v322, %v1485
        %v1507 = vmul.f32 %v323, %v1485
        %v1508 = vmul.f32 %v324, %v1485
        %v1509 = vmul.f32 %v325, %v1485
        %v1510 = vmul.f32 %v326, %v1485
        %v1511 = vmul.f32 %v327, %v1485
        %v1512 = vmul.f32 %v328, %v1485
        %v1513 = vmul.f32 %v329, %v1485
        %v1514 = vmul.f32 %v330, %v1485
        %v1515 = vmul.f32 %v331, %v1485
        %v1516 = vmul.f32 %v332, %v1485
        %v1517 = vmul.f32 %v333, %v1485
        %v1518 = vmul.f32 %v334, %v1485
        %v1519 = vmul.f32 %v335, %v1485
        %v1520 = vmul.f32 %v336, %v1485
        %v1521 = vmul.f32 %v337, %v1485
        %v1522 = vmul.f32 %v338, %v1485
        %v1523 = vmul.f32 %v339, %v1485
        %v1524 = vmul.f32 %v340, %v1485
        %v1525 = vmul.f32 %v341, %v1485
        %v1526 = vmul.f32 %v342, %v1485
        %v1527 = vmul.f32 %v343, %v1485
        %v1528 = vmul.f32 %v344, %v1485
        %v1529 = vmul.f32 %v345, %v1485
        %v1530 = vmul.f32 %v346, %v1485
        %v1531 = vmul.f32 %v347, %v1485
        %v1532 = vmul.f32 %v348, %v1485
        %v1533 = vmul.f32 %v349, %v1485
        %v1582 = vrot.slane %v1486, 2
        %v1583 = vrot.slane %v1487, 2
        %v1584 = vsel %vm1340, %v1582, %v1583
        %v1585 = vrot.slane %v1488, 2
        %v1586 = vsel %vm1340, %v1583, %v1585
        %v1587 = vrot.slane %v1489, 2
        %v1588 = vrot.slane %v1490, 2
        %v1589 = vsel %vm1340, %v1587, %v1588
        %v1590 = vrot.slane %v1491, 2
        %v1591 = vsel %vm1340, %v1588, %v1590
        %v1592 = vrot.slane %v1492, 2
        %v1593 = vrot.slane %v1493, 2
        %v1594 = vsel %vm1340, %v1592, %v1593
        %v1595 = vrot.slane %v1494, 2
        %v1596 = vsel %vm1340, %v1593, %v1595
        %v1597 = vrot.slane %v1495, 2
        %v1598 = vrot.slane %v1496, 2
        %v1599 = vsel %vm1340, %v1597, %v1598
        %v1600 = vrot.slane %v1497, 2
        %v1601 = vsel %vm1340, %v1598, %v1600
        %v1602 = vrot.slane %v1498, 2
        %v1603 = vrot.slane %v1499, 2
        %v1604 = vsel %vm1340, %v1602, %v1603
        %v1605 = vrot.slane %v1500, 2
        %v1606 = vsel %vm1340, %v1603, %v1605
        %v1607 = vrot.slane %v1501, 2
        %v1608 = vrot.slane %v1502, 2
        %v1609 = vsel %vm1340, %v1607, %v1608
        %v1610 = vrot.slane %v1503, 2
        %v1611 = vsel %vm1340, %v1608, %v1610
        %v1612 = vrot.slane %v1504, 2
        %v1613 = vrot.slane %v1505, 2
        %v1614 = vsel %vm1340, %v1612, %v1613
        %v1615 = vrot.slane %v1506, 2
        %v1616 = vsel %vm1340, %v1613, %v1615
        %v1617 = vrot.slane %v1507, 2
        %v1618 = vrot.slane %v1508, 2
        %v1619 = vsel %vm1340, %v1617, %v1618
        %v1620 = vrot.slane %v1509, 2
        %v1621 = vsel %vm1340, %v1618, %v1620
        %v1622 = vrot.slane %v1510, 2
        %v1623 = vrot.slane %v1511, 2
        %v1624 = vsel %vm1340, %v1622, %v1623
        %v1625 = vrot.slane %v1512, 2
        %v1626 = vsel %vm1340, %v1623, %v1625
        %v1627 = vrot.slane %v1513, 2
        %v1628 = vrot.slane %v1514, 2
        %v1629 = vsel %vm1340, %v1627, %v1628
        %v1630 = vrot.slane %v1515, 2
        %v1631 = vsel %vm1340, %v1628, %v1630
        %v1632 = vrot.slane %v1516, 2
        %v1633 = vrot.slane %v1517, 2
        %v1634 = vsel %vm1340, %v1632, %v1633
        %v1635 = vrot.slane %v1518, 2
        %v1636 = vsel %vm1340, %v1633, %v1635
        %v1637 = vrot.slane %v1519, 2
        %v1638 = vrot.slane %v1520, 2
        %v1639 = vsel %vm1340, %v1637, %v1638
        %v1640 = vrot.slane %v1521, 2
        %v1641 = vsel %vm1340, %v1638, %v1640
        %v1642 = vrot.slane %v1522, 2
        %v1643 = vrot.slane %v1523, 2
        %v1644 = vsel %vm1340, %v1642, %v1643
        %v1645 = vrot.slane %v1524, 2
        %v1646 = vsel %vm1340, %v1643, %v1645
        %v1647 = vrot.slane %v1525, 2
        %v1648 = vrot.slane %v1526, 2
        %v1649 = vsel %vm1340, %v1647, %v1648
        %v1650 = vrot.slane %v1527, 2
        %v1651 = vsel %vm1340, %v1648, %v1650
        %v1652 = vrot.slane %v1528, 2
        %v1653 = vrot.slane %v1529, 2
        %v1654 = vsel %vm1340, %v1652, %v1653
        %v1655 = vrot.slane %v1530, 2
        %v1656 = vsel %vm1340, %v1653, %v1655
        %v1657 = vrot.slane %v1531, 2
        %v1658 = vrot.slane %v1532, 2
        %v1659 = vsel %vm1340, %v1657, %v1658
        %v1660 = vrot.slane %v1533, 2
        %v1661 = vsel %vm1340, %v1658, %v1660
        %v1694 = vadd.f32 %v1453, %v1584
        %v1695 = vadd.f32 %v1454, %v1586
        %v1696 = vadd.f32 %v1455, %v1589
        %v1697 = vadd.f32 %v1456, %v1591
        %v1698 = vadd.f32 %v1457, %v1594
        %v1699 = vadd.f32 %v1458, %v1596
        %v1700 = vadd.f32 %v1459, %v1599
        %v1701 = vadd.f32 %v1460, %v1601
        %v1702 = vadd.f32 %v1461, %v1604
        %v1703 = vadd.f32 %v1462, %v1606
        %v1704 = vadd.f32 %v1463, %v1609
        %v1705 = vadd.f32 %v1464, %v1611
        %v1706 = vadd.f32 %v1465, %v1614
        %v1707 = vadd.f32 %v1466, %v1616
        %v1708 = vadd.f32 %v1467, %v1619
        %v1709 = vadd.f32 %v1468, %v1621
        %v1710 = vadd.f32 %v1469, %v1624
        %v1711 = vadd.f32 %v1470, %v1626
        %v1712 = vadd.f32 %v1471, %v1629
        %v1713 = vadd.f32 %v1472, %v1631
        %v1714 = vadd.f32 %v1473, %v1634
        %v1715 = vadd.f32 %v1474, %v1636
        %v1716 = vadd.f32 %v1475, %v1639
        %v1717 = vadd.f32 %v1476, %v1641
        %v1718 = vadd.f32 %v1477, %v1644
        %v1719 = vadd.f32 %v1478, %v1646
        %v1720 = vadd.f32 %v1479, %v1649
        %v1721 = vadd.f32 %v1480, %v1651
        %v1722 = vadd.f32 %v1481, %v1654
        %v1723 = vadd.f32 %v1482, %v1656
        %v1724 = vadd.f32 %v1483, %v1659
        %v1725 = vadd.f32 %v1484, %v1661
        %v1726 = vperm.slane %v355, 2
        %v1727 = vmul.f32 %v305, %v1726
        %v1728 = vmul.f32 %v306, %v1726
        %v1729 = vmul.f32 %v307, %v1726
        %v1730 = vmul.f32 %v308, %v1726
        %v1731 = vmul.f32 %v309, %v1726
        %v1732 = vmul.f32 %v310, %v1726
        %v1733 = vmul.f32 %v311, %v1726
        %v1734 = vmul.f32 %v312, %v1726
        %v1735 = vmul.f32 %v313, %v1726
        %v1736 = vmul.f32 %v314, %v1726
        %v1737 = vmul.f32 %v315, %v1726
        %v1738 = vmul.f32 %v316, %v1726
        %v1739 = vmul.f32 %v317, %v1726
        %v1740 = vmul.f32 %v318, %v1726
        %v1741 = vmul.f32 %v319, %v1726
        %v1742 = vmul.f32 %v320, %v1726
        %v1743 = vmul.f32 %v321, %v1726
        %v1744 = vmul.f32 %v322, %v1726
        %v1745 = vmul.f32 %v323, %v1726
        %v1746 = vmul.f32 %v324, %v1726
        %v1747 = vmul.f32 %v325, %v1726
        %v1748 = vmul.f32 %v326, %v1726
        %v1749 = vmul.f32 %v327, %v1726
        %v1750 = vmul.f32 %v328, %v1726
        %v1751 = vmul.f32 %v329, %v1726
        %v1752 = vmul.f32 %v330, %v1726
        %v1753 = vmul.f32 %v331, %v1726
        %v1754 = vmul.f32 %v332, %v1726
        %v1755 = vmul.f32 %v333, %v1726
        %v1756 = vmul.f32 %v334, %v1726
        %v1757 = vmul.f32 %v335, %v1726
        %v1758 = vmul.f32 %v336, %v1726
        %v1759 = vmul.f32 %v337, %v1726
        %v1760 = vmul.f32 %v338, %v1726
        %v1761 = vmul.f32 %v339, %v1726
        %v1762 = vmul.f32 %v340, %v1726
        %v1763 = vmul.f32 %v341, %v1726
        %v1764 = vmul.f32 %v342, %v1726
        %v1765 = vmul.f32 %v343, %v1726
        %v1766 = vmul.f32 %v344, %v1726
        %v1767 = vmul.f32 %v345, %v1726
        %v1768 = vmul.f32 %v346, %v1726
        %v1769 = vmul.f32 %v347, %v1726
        %v1770 = vmul.f32 %v348, %v1726
        %v1771 = vmul.f32 %v349, %v1726
        %v1772 = vmul.f32 %v350, %v1726
        %v1773 = vmul.f32 %v351, %v1726
        %v1774 = vmul.f32 %v352, %v1726
        %v1823 = vrot.slane %v1727, 2
        %v1824 = vrot.slane %v1728, 2
        %v1825 = vsel %vm1340, %v1823, %v1824
        %v1826 = vrot.slane %v1729, 2
        %v1827 = vsel %vm1340, %v1824, %v1826
        %v1828 = vrot.slane %v1730, 2
        %v1829 = vrot.slane %v1731, 2
        %v1830 = vsel %vm1340, %v1828, %v1829
        %v1831 = vrot.slane %v1732, 2
        %v1832 = vsel %vm1340, %v1829, %v1831
        %v1833 = vrot.slane %v1733, 2
        %v1834 = vrot.slane %v1734, 2
        %v1835 = vsel %vm1340, %v1833, %v1834
        %v1836 = vrot.slane %v1735, 2
        %v1837 = vsel %vm1340, %v1834, %v1836
        %v1838 = vrot.slane %v1736, 2
        %v1839 = vrot.slane %v1737, 2
        %v1840 = vsel %vm1340, %v1838, %v1839
        %v1841 = vrot.slane %v1738, 2
        %v1842 = vsel %vm1340, %v1839, %v1841
        %v1843 = vrot.slane %v1739, 2
        %v1844 = vrot.slane %v1740, 2
        %v1845 = vsel %vm1340, %v1843, %v1844
        %v1846 = vrot.slane %v1741, 2
        %v1847 = vsel %vm1340, %v1844, %v1846
        %v1848 = vrot.slane %v1742, 2
        %v1849 = vrot.slane %v1743, 2
        %v1850 = vsel %vm1340, %v1848, %v1849
        %v1851 = vrot.slane %v1744, 2
        %v1852 = vsel %vm1340, %v1849, %v1851
        %v1853 = vrot.slane %v1745, 2
        %v1854 = vrot.slane %v1746, 2
        %v1855 = vsel %vm1340, %v1853, %v1854
        %v1856 = vrot.slane %v1747, 2
        %v1857 = vsel %vm1340, %v1854, %v1856
        %v1858 = vrot.slane %v1748, 2
        %v1859 = vrot.slane %v1749, 2
        %v1860 = vsel %vm1340, %v1858, %v1859
        %v1861 = vrot.slane %v1750, 2
        %v1862 = vsel %vm1340, %v1859, %v1861
        %v1863 = vrot.slane %v1751, 2
        %v1864 = vrot.slane %v1752, 2
        %v1865 = vsel %vm1340, %v1863, %v1864
        %v1866 = vrot.slane %v1753, 2
        %v1867 = vsel %vm1340, %v1864, %v1866
        %v1868 = vrot.slane %v1754, 2
        %v1869 = vrot.slane %v1755, 2
        %v1870 = vsel %vm1340, %v1868, %v1869
        %v1871 = vrot.slane %v1756, 2
        %v1872 = vsel %vm1340, %v1869, %v1871
        %v1873 = vrot.slane %v1757, 2
        %v1874 = vrot.slane %v1758, 2
        %v1875 = vsel %vm1340, %v1873, %v1874
        %v1876 = vrot.slane %v1759, 2
        %v1877 = vsel %vm1340, %v1874, %v1876
        %v1878 = vrot.slane %v1760, 2
        %v1879 = vrot.slane %v1761, 2
        %v1880 = vsel %vm1340, %v1878, %v1879
        %v1881 = vrot.slane %v1762, 2
        %v1882 = vsel %vm1340, %v1879, %v1881
        %v1883 = vrot.slane %v1763, 2
        %v1884 = vrot.slane %v1764, 2
        %v1885 = vsel %vm1340, %v1883, %v1884
        %v1886 = vrot.slane %v1765, 2
        %v1887 = vsel %vm1340, %v1884, %v1886
        %v1888 = vrot.slane %v1766, 2
        %v1889 = vrot.slane %v1767, 2
        %v1890 = vsel %vm1340, %v1888, %v1889
        %v1891 = vrot.slane %v1768, 2
        %v1892 = vsel %vm1340, %v1889, %v1891
        %v1893 = vrot.slane %v1769, 2
        %v1894 = vrot.slane %v1770, 2
        %v1895 = vsel %vm1340, %v1893, %v1894
        %v1896 = vrot.slane %v1771, 2
        %v1897 = vsel %vm1340, %v1894, %v1896
        %v1898 = vrot.slane %v1772, 2
        %v1899 = vrot.slane %v1773, 2
        %v1900 = vsel %vm1340, %v1898, %v1899
        %v1901 = vrot.slane %v1774, 2
        %v1902 = vsel %vm1340, %v1899, %v1901
        %v1935 = vadd.f32 %v1694, %v1825
        %v1936 = vadd.f32 %v1695, %v1827
        %v1937 = vadd.f32 %v1696, %v1830
        %v1938 = vadd.f32 %v1697, %v1832
        %v1939 = vadd.f32 %v1698, %v1835
        %v1940 = vadd.f32 %v1699, %v1837
        %v1941 = vadd.f32 %v1700, %v1840
        %v1942 = vadd.f32 %v1701, %v1842
        %v1943 = vadd.f32 %v1702, %v1845
        %v1944 = vadd.f32 %v1703, %v1847
        %v1945 = vadd.f32 %v1704, %v1850
        %v1946 = vadd.f32 %v1705, %v1852
        %v1947 = vadd.f32 %v1706, %v1855
        %v1948 = vadd.f32 %v1707, %v1857
        %v1949 = vadd.f32 %v1708, %v1860
        %v1950 = vadd.f32 %v1709, %v1862
        %v1951 = vadd.f32 %v1710, %v1865
        %v1952 = vadd.f32 %v1711, %v1867
        %v1953 = vadd.f32 %v1712, %v1870
        %v1954 = vadd.f32 %v1713, %v1872
        %v1955 = vadd.f32 %v1714, %v1875
        %v1956 = vadd.f32 %v1715, %v1877
        %v1957 = vadd.f32 %v1716, %v1880
        %v1958 = vadd.f32 %v1717, %v1882
        %v1959 = vadd.f32 %v1718, %v1885
        %v1960 = vadd.f32 %v1719, %v1887
        %v1961 = vadd.f32 %v1720, %v1890
        %v1962 = vadd.f32 %v1721, %v1892
        %v1963 = vadd.f32 %v1722, %v1895
        %v1964 = vadd.f32 %v1723, %v1897
        %v1965 = vadd.f32 %v1724, %v1900
        %v1966 = vadd.f32 %v1725, %v1902
        %v1967 = vpack.c.bf16 %v1936, %v1935
        %v1968 = vpack.c.bf16 %v1938, %v1937
        %v1969 = vpack.c.bf16 %v1940, %v1939
        %v1970 = vpack.c.bf16 %v1942, %v1941
        %v1971 = vpack.c.bf16 %v1944, %v1943
        %v1972 = vpack.c.bf16 %v1946, %v1945
        %v1973 = vpack.c.bf16 %v1948, %v1947
        %v1974 = vpack.c.bf16 %v1950, %v1949
        %v1975 = vpack.c.bf16 %v1952, %v1951
        %v1976 = vpack.c.bf16 %v1954, %v1953
        %v1977 = vpack.c.bf16 %v1956, %v1955
        %v1978 = vpack.c.bf16 %v1958, %v1957
        %v1979 = vpack.c.bf16 %v1960, %v1959
        %v1980 = vpack.c.bf16 %v1962, %v1961
        %v1981 = vpack.c.bf16 %v1964, %v1963
        %v1982 = vpack.c.bf16 %v1966, %v1965
        %v1983 = vld [vmem:[%s2] sm:$0x3]
        %vm1984 = vcmask 31744
        %v1986 = vsel %vm1984, %v1967, 0
        %v1989 = vsel %vm1984, %v1968, 0
        %v1992 = vsel %vm1984, %v1969, 0
        %v1995 = vsel %vm1984, %v1970, 0
        %v1998 = vsel %vm1984, %v1971, 0
        %v2001 = vsel %vm1984, %v1972, 0
        %v2004 = vsel %vm1984, %v1973, 0
        %v2007 = vsel %vm1984, %v1974, 0
        %v2010 = vsel %vm1984, %v1975, 0
        %v2013 = vsel %vm1984, %v1976, 0
        %v2016 = vsel %vm1984, %v1977, 0
        %v2019 = vsel %vm1984, %v1978, 0
        %v2022 = vsel %vm1984, %v1979, 0
        %v2025 = vsel %vm1984, %v1980, 0
        %v2028 = vsel %vm1984, %v1981, 0
        %v2031 = vsel %vm1984, %v1982, 0
        %vm2033 = vcmask 1041408
        %v2035 = vsel %vm2033, %v1983, 0
        %2037 = vmatpush.bf16.msra.mxu0 0
        %2038 = vmatpush.bf16.msra.mxu0 0
        %2039 = vmatpush.bf16.msra.mxu0 0
        %2040 = vmatpush.bf16.msra.mxu0 0
        %2041 = vmatpush.bf16.msra.mxu0 0
        %2042 = vmatpush.bf16.msra.mxu0 0
        %2043 = vmatpush.bf16.msra.mxu0 0
        %2044 = vmatpush.bf16.msra.mxu0 %v2035
        %2045 = vmatmul.bf16.gmra.mxu0 %v1986
        %v2046 = vpop.f32.mrf.mxu0
        %v2047 = vadd.f32 0.0, %v2046
        %v2048 = vpop.f32.mrf.mxu0
        %v2049 = vadd.f32 0.0, %v2048
        %2050 = vmatmul.bf16.gmra.mxu0 %v1989
        %v2051 = vpop.f32.mrf.mxu0
        %v2052 = vadd.f32 0.0, %v2051
        %v2053 = vpop.f32.mrf.mxu0
        %v2054 = vadd.f32 0.0, %v2053
        %2055 = vmatmul.bf16.gmra.mxu0 %v1992
        %v2056 = vpop.f32.mrf.mxu0
        %v2057 = vadd.f32 0.0, %v2056
        %v2058 = vpop.f32.mrf.mxu0
        %v2059 = vadd.f32 0.0, %v2058
        %2060 = vmatmul.bf16.gmra.mxu0 %v1995
        %v2061 = vpop.f32.mrf.mxu0
        %v2062 = vadd.f32 0.0, %v2061
        %v2063 = vpop.f32.mrf.mxu0
        %v2064 = vadd.f32 0.0, %v2063
        %2065 = vmatmul.bf16.gmra.mxu0 %v1998
        %v2066 = vpop.f32.mrf.mxu0
        %v2067 = vadd.f32 0.0, %v2066
        %v2068 = vpop.f32.mrf.mxu0
        %v2069 = vadd.f32 0.0, %v2068
        %2070 = vmatmul.bf16.gmra.mxu0 %v2001
        %v2071 = vpop.f32.mrf.mxu0
        %v2072 = vadd.f32 0.0, %v2071
        %v2073 = vpop.f32.mrf.mxu0
        %v2074 = vadd.f32 0.0, %v2073
        %2075 = vmatmul.bf16.gmra.mxu0 %v2004
        %v2076 = vpop.f32.mrf.mxu0
        %v2077 = vadd.f32 0.0, %v2076
        %v2078 = vpop.f32.mrf.mxu0
        %v2079 = vadd.f32 0.0, %v2078
        %2080 = vmatmul.bf16.gmra.mxu0 %v2007
        %v2081 = vpop.f32.mrf.mxu0
        %v2082 = vadd.f32 0.0, %v2081
        %v2083 = vpop.f32.mrf.mxu0
        %v2084 = vadd.f32 0.0, %v2083
        %2085 = vmatmul.bf16.gmra.mxu0 %v2010
        %v2086 = vpop.f32.mrf.mxu0
        %v2087 = vadd.f32 0.0, %v2086
        %v2088 = vpop.f32.mrf.mxu0
        %v2089 = vadd.f32 0.0, %v2088
        %2090 = vmatmul.bf16.gmra.mxu0 %v2013
        %v2091 = vpop.f32.mrf.mxu0
        %v2092 = vadd.f32 0.0, %v2091
        %v2093 = vpop.f32.mrf.mxu0
        %v2094 = vadd.f32 0.0, %v2093
        %2095 = vmatmul.bf16.gmra.mxu0 %v2016
        %v2096 = vpop.f32.mrf.mxu0
        %v2097 = vadd.f32 0.0, %v2096
        %v2098 = vpop.f32.mrf.mxu0
        %v2099 = vadd.f32 0.0, %v2098
        %2100 = vmatmul.bf16.gmra.mxu0 %v2019
        %v2101 = vpop.f32.mrf.mxu0
        %v2102 = vadd.f32 0.0, %v2101
        %v2103 = vpop.f32.mrf.mxu0
        %v2104 = vadd.f32 0.0, %v2103
        %2105 = vmatmul.bf16.gmra.mxu0 %v2022
        %v2106 = vpop.f32.mrf.mxu0
        %v2107 = vadd.f32 0.0, %v2106
        %v2108 = vpop.f32.mrf.mxu0
        %v2109 = vadd.f32 0.0, %v2108
        %2110 = vmatmul.bf16.gmra.mxu0 %v2025
        %v2111 = vpop.f32.mrf.mxu0
        %v2112 = vadd.f32 0.0, %v2111
        %v2113 = vpop.f32.mrf.mxu0
        %v2114 = vadd.f32 0.0, %v2113
        %2115 = vmatmul.bf16.gmra.mxu0 %v2028
        %v2116 = vpop.f32.mrf.mxu0
        %v2117 = vadd.f32 0.0, %v2116
        %v2118 = vpop.f32.mrf.mxu0
        %v2119 = vadd.f32 0.0, %v2118
        %2120 = vmatmul.bf16.gmra.mxu0 %v2031
        %v2121 = vpop.f32.mrf.mxu0
        %v2122 = vadd.f32 0.0, %v2121
        %v2123 = vpop.f32.mrf.mxu0
        %v2124 = vadd.f32 0.0, %v2123
        %2125 = vdwg.mxu0
        %vm2126 = vcmask 64512
        %v2127 = vsel %vm2126, %v2047, 0.0
        %v2128 = vsel %vm2126, %v2049, 0.0
        %v2129 = vadd.f32 %v2127, %v2128
        %v2130 = vsel %vm2126, %v2052, 0.0
        %v2131 = vadd.f32 %v2129, %v2130
        %v2132 = vsel %vm2126, %v2054, 0.0
        %v2133 = vadd.f32 %v2131, %v2132
        %v2134 = vsel %vm2126, %v2057, 0.0
        %v2135 = vadd.f32 %v2133, %v2134
        %v2136 = vsel %vm2126, %v2059, 0.0
        %v2137 = vadd.f32 %v2135, %v2136
        %v2138 = vsel %vm2126, %v2062, 0.0
        %v2139 = vadd.f32 %v2137, %v2138
        %v2140 = vsel %vm2126, %v2064, 0.0
        %v2141 = vadd.f32 %v2139, %v2140
        %v2142 = vsel %vm2126, %v2067, 0.0
        %v2143 = vadd.f32 %v2141, %v2142
        %v2144 = vsel %vm2126, %v2069, 0.0
        %v2145 = vadd.f32 %v2143, %v2144
        %v2146 = vsel %vm2126, %v2072, 0.0
        %v2147 = vadd.f32 %v2145, %v2146
        %v2148 = vsel %vm2126, %v2074, 0.0
        %v2149 = vadd.f32 %v2147, %v2148
        %v2150 = vsel %vm2126, %v2077, 0.0
        %v2151 = vadd.f32 %v2149, %v2150
        %v2152 = vsel %vm2126, %v2079, 0.0
        %v2153 = vadd.f32 %v2151, %v2152
        %v2154 = vsel %vm2126, %v2082, 0.0
        %v2155 = vadd.f32 %v2153, %v2154
        %v2156 = vsel %vm2126, %v2084, 0.0
        %v2157 = vadd.f32 %v2155, %v2156
        %v2158 = vsel %vm2126, %v2087, 0.0
        %v2159 = vadd.f32 %v2157, %v2158
        %v2160 = vsel %vm2126, %v2089, 0.0
        %v2161 = vadd.f32 %v2159, %v2160
        %v2162 = vsel %vm2126, %v2092, 0.0
        %v2163 = vadd.f32 %v2161, %v2162
        %v2164 = vsel %vm2126, %v2094, 0.0
        %v2165 = vadd.f32 %v2163, %v2164
        %v2166 = vsel %vm2126, %v2097, 0.0
        %v2167 = vadd.f32 %v2165, %v2166
        %v2168 = vsel %vm2126, %v2099, 0.0
        %v2169 = vadd.f32 %v2167, %v2168
        %v2170 = vsel %vm2126, %v2102, 0.0
        %v2171 = vadd.f32 %v2169, %v2170
        %v2172 = vsel %vm2126, %v2104, 0.0
        %v2173 = vadd.f32 %v2171, %v2172
        %v2174 = vsel %vm2126, %v2107, 0.0
        %v2175 = vadd.f32 %v2173, %v2174
        %v2176 = vsel %vm2126, %v2109, 0.0
        %v2177 = vadd.f32 %v2175, %v2176
        %v2178 = vsel %vm2126, %v2112, 0.0
        %v2179 = vadd.f32 %v2177, %v2178
        %v2180 = vsel %vm2126, %v2114, 0.0
        %v2181 = vadd.f32 %v2179, %v2180
        %v2182 = vsel %vm2126, %v2117, 0.0
        %v2183 = vadd.f32 %v2181, %v2182
        %v2184 = vsel %vm2126, %v2119, 0.0
        %v2185 = vadd.f32 %v2183, %v2184
        %v2186 = vsel %vm2126, %v2122, 0.0
        %v2187 = vadd.f32 %v2185, %v2186
        %v2188 = vsel %vm2126, %v2124, 0.0
        %v2189 = vadd.f32 %v2187, %v2188
        %v2190 = vrot.slane %v2189, 4
        %v2191 = vadd.f32 %v2189, %v2190
        %v2192 = vrot.slane %v2191, 2
        %v2193 = vadd.f32 %v2191, %v2192
        %v2194 = vrot.slane %v2193, 1
        %v2195 = vadd.f32 %v2193, %v2194
        %vm2196 = vcmask 57344
        %2197 = vst.msk [vmem:[%s227] sm:$0x1] %vm2196, %v2195
        %v2198 = vmul.f32 %v2047, %v2047
        %v2199 = vmul.f32 %v2049, %v2049
        %v2200 = vmul.f32 %v2052, %v2052
        %v2201 = vmul.f32 %v2054, %v2054
        %v2202 = vmul.f32 %v2057, %v2057
        %v2203 = vmul.f32 %v2059, %v2059
        %v2204 = vmul.f32 %v2062, %v2062
        %v2205 = vmul.f32 %v2064, %v2064
        %v2206 = vmul.f32 %v2067, %v2067
        %v2207 = vmul.f32 %v2069, %v2069
        %v2208 = vmul.f32 %v2072, %v2072
        %v2209 = vmul.f32 %v2074, %v2074
        %v2210 = vmul.f32 %v2077, %v2077
        %v2211 = vmul.f32 %v2079, %v2079
        %v2212 = vmul.f32 %v2082, %v2082
        %v2213 = vmul.f32 %v2084, %v2084
        %v2214 = vmul.f32 %v2087, %v2087
        %v2215 = vmul.f32 %v2089, %v2089
        %v2216 = vmul.f32 %v2092, %v2092
        %v2217 = vmul.f32 %v2094, %v2094
        %v2218 = vmul.f32 %v2097, %v2097
        %v2219 = vmul.f32 %v2099, %v2099
        %v2220 = vmul.f32 %v2102, %v2102
        %v2221 = vmul.f32 %v2104, %v2104
        %v2222 = vmul.f32 %v2107, %v2107
        %v2223 = vmul.f32 %v2109, %v2109
        %v2224 = vmul.f32 %v2112, %v2112
        %v2225 = vmul.f32 %v2114, %v2114
        %v2226 = vmul.f32 %v2117, %v2117
        %v2227 = vmul.f32 %v2119, %v2119
        %v2228 = vmul.f32 %v2122, %v2122
        %v2229 = vmul.f32 %v2124, %v2124
        %v2230 = vsel %vm2126, %v2198, 0.0
        %v2231 = vsel %vm2126, %v2199, 0.0
        %v2232 = vadd.f32 %v2230, %v2231
        %v2233 = vsel %vm2126, %v2200, 0.0
        %v2234 = vadd.f32 %v2232, %v2233
        %v2235 = vsel %vm2126, %v2201, 0.0
        %v2236 = vadd.f32 %v2234, %v2235
        %v2237 = vsel %vm2126, %v2202, 0.0
        %v2238 = vadd.f32 %v2236, %v2237
        %v2239 = vsel %vm2126, %v2203, 0.0
        %v2240 = vadd.f32 %v2238, %v2239
        %v2241 = vsel %vm2126, %v2204, 0.0
        %v2242 = vadd.f32 %v2240, %v2241
        %v2243 = vsel %vm2126, %v2205, 0.0
        %v2244 = vadd.f32 %v2242, %v2243
        %v2245 = vsel %vm2126, %v2206, 0.0
        %v2246 = vadd.f32 %v2244, %v2245
        %v2247 = vsel %vm2126, %v2207, 0.0
        %v2248 = vadd.f32 %v2246, %v2247
        %v2249 = vsel %vm2126, %v2208, 0.0
        %v2250 = vadd.f32 %v2248, %v2249
        %v2251 = vsel %vm2126, %v2209, 0.0
        %v2252 = vadd.f32 %v2250, %v2251
        %v2253 = vsel %vm2126, %v2210, 0.0
        %v2254 = vadd.f32 %v2252, %v2253
        %v2255 = vsel %vm2126, %v2211, 0.0
        %v2256 = vadd.f32 %v2254, %v2255
        %v2257 = vsel %vm2126, %v2212, 0.0
        %v2258 = vadd.f32 %v2256, %v2257
        %v2259 = vsel %vm2126, %v2213, 0.0
        %v2260 = vadd.f32 %v2258, %v2259
        %v2261 = vsel %vm2126, %v2214, 0.0
        %v2262 = vadd.f32 %v2260, %v2261
        %v2263 = vsel %vm2126, %v2215, 0.0
        %v2264 = vadd.f32 %v2262, %v2263
        %v2265 = vsel %vm2126, %v2216, 0.0
        %v2266 = vadd.f32 %v2264, %v2265
        %v2267 = vsel %vm2126, %v2217, 0.0
        %v2268 = vadd.f32 %v2266, %v2267
        %v2269 = vsel %vm2126, %v2218, 0.0
        %v2270 = vadd.f32 %v2268, %v2269
        %v2271 = vsel %vm2126, %v2219, 0.0
        %v2272 = vadd.f32 %v2270, %v2271
        %v2273 = vsel %vm2126, %v2220, 0.0
        %v2274 = vadd.f32 %v2272, %v2273
        %v2275 = vsel %vm2126, %v2221, 0.0
        %v2276 = vadd.f32 %v2274, %v2275
        %v2277 = vsel %vm2126, %v2222, 0.0
        %v2278 = vadd.f32 %v2276, %v2277
        %v2279 = vsel %vm2126, %v2223, 0.0
        %v2280 = vadd.f32 %v2278, %v2279
        %v2281 = vsel %vm2126, %v2224, 0.0
        %v2282 = vadd.f32 %v2280, %v2281
        %v2283 = vsel %vm2126, %v2225, 0.0
        %v2284 = vadd.f32 %v2282, %v2283
        %v2285 = vsel %vm2126, %v2226, 0.0
        %v2286 = vadd.f32 %v2284, %v2285
        %v2287 = vsel %vm2126, %v2227, 0.0
        %v2288 = vadd.f32 %v2286, %v2287
        %v2289 = vsel %vm2126, %v2228, 0.0
        %v2290 = vadd.f32 %v2288, %v2289
        %v2291 = vsel %vm2126, %v2229, 0.0
        %v2292 = vadd.f32 %v2290, %v2291
        %v2293 = vrot.slane %v2292, 4
        %v2294 = vadd.f32 %v2292, %v2293
        %v2295 = vrot.slane %v2294, 2
        %v2296 = vadd.f32 %v2294, %v2295
        %v2297 = vrot.slane %v2296, 1
        %v2298 = vadd.f32 %v2296, %v2297
        %2299 = vst.msk [vmem:[%s233] sm:$0x1] %vm2196, %v2298
        %2300 = vst.msk [vmem:[%s243] sm:$0xff] %vm2126, %v2047
        %2301 = vst.msk [vmem:[%s243 + $0x8] sm:$0xff] %vm2126, %v2049
        %2302 = vst.msk [vmem:[%s243 + $0x10] sm:$0xff] %vm2126, %v2052
        %2303 = vst.msk [vmem:[%s243 + $0x18] sm:$0xff] %vm2126, %v2054
        %2304 = vst.msk [vmem:[%s243 + $0x20] sm:$0xff] %vm2126, %v2057
        %2305 = vst.msk [vmem:[%s243 + $0x28] sm:$0xff] %vm2126, %v2059
        %2306 = vst.msk [vmem:[%s243 + $0x30] sm:$0xff] %vm2126, %v2062
        %2307 = vst.msk [vmem:[%s243 + $0x38] sm:$0xff] %vm2126, %v2064
        %2308 = vst.msk [vmem:[%s243 + $0x40] sm:$0xff] %vm2126, %v2067
        %2309 = vst.msk [vmem:[%s243 + $0x48] sm:$0xff] %vm2126, %v2069
        %2310 = vst.msk [vmem:[%s243 + $0x50] sm:$0xff] %vm2126, %v2072
        %2311 = vst.msk [vmem:[%s243 + $0x58] sm:$0xff] %vm2126, %v2074
        %2312 = vst.msk [vmem:[%s243 + $0x60] sm:$0xff] %vm2126, %v2077
        %2313 = vst.msk [vmem:[%s243 + $0x68] sm:$0xff] %vm2126, %v2079
        %2314 = vst.msk [vmem:[%s243 + $0x70] sm:$0xff] %vm2126, %v2082
        %2315 = vst.msk [vmem:[%s243 + $0x78] sm:$0xff] %vm2126, %v2084
        %2316 = vst.msk [vmem:[%s243 + $0x80] sm:$0xff] %vm2126, %v2087
        %2317 = vst.msk [vmem:[%s243 + $0x88] sm:$0xff] %vm2126, %v2089
        %2318 = vst.msk [vmem:[%s243 + $0x90] sm:$0xff] %vm2126, %v2092
        %2319 = vst.msk [vmem:[%s243 + $0x98] sm:$0xff] %vm2126, %v2094
        %2320 = vst.msk [vmem:[%s243 + $0xa0] sm:$0xff] %vm2126, %v2097
        %2321 = vst.msk [vmem:[%s243 + $0xa8] sm:$0xff] %vm2126, %v2099
        %2322 = vst.msk [vmem:[%s243 + $0xb0] sm:$0xff] %vm2126, %v2102
        %2323 = vst.msk [vmem:[%s243 + $0xb8] sm:$0xff] %vm2126, %v2104
        %2324 = vst.msk [vmem:[%s243 + $0xc0] sm:$0xff] %vm2126, %v2107
        %2325 = vst.msk [vmem:[%s243 + $0xc8] sm:$0xff] %vm2126, %v2109
        %2326 = vst.msk [vmem:[%s243 + $0xd0] sm:$0xff] %vm2126, %v2112
        %2327 = vst.msk [vmem:[%s243 + $0xd8] sm:$0xff] %vm2126, %v2114
        %2328 = vst.msk [vmem:[%s243 + $0xe0] sm:$0xff] %vm2126, %v2117
        %2329 = vst.msk [vmem:[%s243 + $0xe8] sm:$0xff] %vm2126, %v2119
        %2330 = vst.msk [vmem:[%s243 + $0xf0] sm:$0xff] %vm2126, %v2122
        %2331 = vst.msk [vmem:[%s243 + $0xf8] sm:$0xff] %vm2126, %v2124
        %p2332 = scmp.lt.s32.totalorder %s23, 1
        %s2333 = scalar_select %p2332, %s23, 1
        %s2334 = smul.addr %s2333, 32
        %s2335 = smul.addr %s2334, 8
        %s2336 = scalar_lea.vmem %s3, %s2335
        %s2337 = sand.u32 %s125, 1
        %s2338 = scalar_lea.sflag [#allocation3], %s2337
        %s2339 = sand.u32 %s125, 1
        %s2340 = scalar_lea.vmem [#allocation2], %s2339
        %s2341 = sand.u32 %s151, 1
        %s2342 = scalar_lea.sflag [#allocation5], %s2341
        %s2343 = sand.u32 %s151, 1
        %s2344 = scalar_lea.vmem [#allocation4], %s2343
        // Predicated region
        $region33: #{tpu_custom_call.1} parent=31 // pred_check
          %p2345 = pneg %p109
        $region34: #{tpu_custom_call.1} parent=31 // pred_check_branch
          %2347 = sbr.rel (%p2345) target = $region36
        $region35: #{tpu_custom_call.1} parent=31 // pred_region
          _
        $region36: #{tpu_custom_call.1} parent=31 // pred_fallthru
          _
        // Predicated region
        $region37: #{tpu_custom_call.1} parent=31 // pred_check
          %p2348 = pneg %p135
        $region38: #{tpu_custom_call.1} parent=31 // pred_check_branch
          %2350 = sbr.rel (%p2348) target = $region40
        $region39: #{tpu_custom_call.1} parent=31 // pred_region
          %2352 = vsyncadd %s2338, 0
          %s2353 = scalar_lea.hbm %s4, %s23
          %s2355 = sshll.u32 %s2340, 4
          %s2356 = int_to_ptr.vmem [resolvable:$true] %s2355
          %s2357 = sshll.u32 %s2353, 4
          %s2358 = int_to_ptr.hbm [resolvable:$true] %s2357
          %2360 = dma.vmem_to_hbm [thread:$0]  %s2356, 16, %s2358, %s2338
        $region40: #{tpu_custom_call.1} parent=31 // pred_fallthru
          _
        // Predicated region
        $region41: #{tpu_custom_call.1} parent=31 // pred_check
          %p2361 = pneg %p161
        $region42: #{tpu_custom_call.1} parent=31 // pred_check_branch
          %2363 = sbr.rel (%p2361) target = $region44
        $region43: #{tpu_custom_call.1} parent=31 // pred_region
          %2365 = vsyncadd %s2342, 0
          %s2366 = scalar_lea.hbm %s5, %s23
          %s2368 = sshll.u32 %s2344, 4
          %s2369 = int_to_ptr.vmem [resolvable:$true] %s2368
          %s2370 = sshll.u32 %s2366, 4
          %s2371 = int_to_ptr.hbm [resolvable:$true] %s2370
          %2373 = dma.vmem_to_hbm [thread:$0]  %s2369, 16, %s2371, %s2342
        $region44: #{tpu_custom_call.1} parent=31 // pred_fallthru
          _
      $region32: #{tpu_custom_call.1} parent=5 // pred_fallthru
        _
      %p2374 = scmp.le.s32.totalorder 2, %s18
      // Predicated region
      $region45: #{tpu_custom_call.1} parent=5 // pred_check
        %p2375 = pneg %p2374
      $region46: #{tpu_custom_call.1} parent=5 // pred_check_branch
        %2377 = sbr.rel (%p2375) target = $region48
      $region47: #{tpu_custom_call.1} parent=5 // pred_region
        %s2378 = ssub.s32 %s18, 2
        // Predicated region
        $region49: #{tpu_custom_call.1} parent=47 // pred_check
          %p2379 = pneg %p115
        $region50: #{tpu_custom_call.1} parent=47 // pred_check_branch
          %2381 = sbr.rel (%p2379) target = $region52
        $region51: #{tpu_custom_call.1} parent=47 // pred_region
          %p2382 = scmp.lt.s32.totalorder %s24, 1
          %s2383 = scalar_select %p2382, %s24, 1
          %s2384 = smul.addr %s2383, 32
          %s2385 = smul.addr %s2384, 8
          %s2386 = scalar_lea.vmem %s3, %s2385
        $region52: #{tpu_custom_call.1} parent=47 // pred_fallthru
          _
        // Predicated region
        $region53: #{tpu_custom_call.1} parent=47 // pred_check
          %p2387 = pneg %p141
        $region54: #{tpu_custom_call.1} parent=47 // pred_check_branch
          %2389 = sbr.rel (%p2387) target = $region56
        $region55: #{tpu_custom_call.1} parent=47 // pred_region
          %s2390 = sand.u32 %s126, 1
          %s2391 = scalar_lea.sflag [#allocation3], %s2390
          %s2392 = sand.u32 %s126, 1
          %s2393 = scalar_lea.vmem [#allocation2], %s2392
          %2395 = dma.done %s2391, 16
        $region56: #{tpu_custom_call.1} parent=47 // pred_fallthru
          _
        // Predicated region
        $region57: #{tpu_custom_call.1} parent=47 // pred_check
          %p2396 = pneg %p167
        $region58: #{tpu_custom_call.1} parent=47 // pred_check_branch
          %2398 = sbr.rel (%p2396) target = $region60
        $region59: #{tpu_custom_call.1} parent=47 // pred_region
          %s2399 = sand.u32 %s152, 1
          %s2400 = scalar_lea.sflag [#allocation5], %s2399
          %s2401 = sand.u32 %s152, 1
          %s2402 = scalar_lea.vmem [#allocation4], %s2401
          %2404 = dma.done %s2400, 16
        $region60: #{tpu_custom_call.1} parent=47 // pred_fallthru
          _
      $region48: #{tpu_custom_call.1} parent=5 // pred_fallthru
        _
    $region6: #{tpu_custom_call.1} parent=1 // loop_footer
      %s22 = sadd.s32 1, %s18
    $region7: #{tpu_custom_call.1} parent=1 // loop_footer_branch
      %17 = sbr.rel target = $region3
    $region8: #{tpu_custom_call.1} parent=1 // loop_exit
      _
    %2405 = vsyncpa [#allocation3], 1
    %s2406 = scalar_lea.sflag [#allocation3], 1
    %2407 = vsyncpa %s2406, 1
    %2408 = vsyncpa [#allocation5], 1
    %s2409 = scalar_lea.sflag [#allocation5], 1
    %2410 = vsyncpa %s2409, 1

</llo_original>
